<compile_context>
chip_gen: v7x
topology: tpu7x:2x2x1
jax: 0.10.0
libtpu: 0.0.40
codegen_flags: <defaults>
</compile_context>

<pallas_src>
import math
from functools import partial

import jax
import jax.numpy as jnp
from jax import lax
from jax.experimental import pallas as pl
from jax.experimental.pallas import tpu as pltpu


# ----------------------------------------------------------------------------
# Config (synthetic, scaled-down RoBERTa)
# ----------------------------------------------------------------------------
CFG = dict(vocab=100, max_pos=64, hidden=32, heads=4, ffn=64, layers=2, num_labels=2)
CFG["head_dim"] = CFG["hidden"] // CFG["heads"]
LANE = 128            # classifier logits padded to one full lane tile
LN_EPS = 1e-5


def _layernorm_f32(h, g, b, eps):
    mu = jnp.mean(h, axis=-1, keepdims=True)
    var = jnp.mean((h - mu) * (h - mu), axis=-1, keepdims=True)
    return (h - mu) * lax.rsqrt(var + eps) * g + b


# ----------------------------------------------------------------------------
# The single fused model kernel: grid = (batch, layer)
# ----------------------------------------------------------------------------
def _model_kernel(lens_ref,                                   # scalar prefetch (SMEM) (B,)
                  wemb_ref, pos_ref, type_ref, embg_ref, embb_ref,
                  wqkv_ref, bqkv_ref, wo_ref, bo_ref, ln1g_ref, ln1b_ref,
                  w1_ref, b1_ref, w2_ref, b2_ref, ln2g_ref, ln2b_ref,
                  wp_ref, bp_ref, wc_ref, bc_ref,
                  out_ref,
                  h_ref, ctx_ref,                             # VMEM scratch (S,H) f32 each
                  *, heads, head_dim, eps, num_layers):
    b = pl.program_id(0)
    l = pl.program_id(1)
    S, H = h_ref.shape
    scale = 1.0 / math.sqrt(head_dim)

    # ---- l == 0: fused embedding sum + LayerNorm into the resident hidden state ----
    @pl.when(l == 0)
    def _():
        emb = wemb_ref[0] + pos_ref[...] + type_ref[...]          # (S,H) f32
        h_ref[...] = _layernorm_f32(emb, embg_ref[...], embb_ref[...], eps)

    # Additive key mask built in-kernel from the per-example length (no mask DMA).
    # Assumes a right-padded attention_mask (standard for this classifier).
    length = lens_ref[b]
    key_pos = lax.broadcasted_iota(jnp.int32, (1, S), 1)
    mask = jnp.where(key_pos < length, 0.0, -1e9)                 # (1,S) f32

    x_f32 = h_ref[...]                                            # (S,H) f32 residual stream
    x = x_f32.astype(jnp.bfloat16)

    # Fused QKV projection: one MXU pass over layer l's (H, 3H) slab.
    qkv = jnp.dot(x, wqkv_ref[0], preferred_element_type=jnp.float32) + bqkv_ref[0]

    # Per-head attention; each head's context is written straight into a contiguous slice
    # of the VMEM ctx scratch (no jnp.concatenate materialization).
    # TODO(synk): at real head_dim=64, process heads in 2-head (128-lane) groups with a
    # batched contraction so every slice/store stays full-lane aligned.
    for h in range(heads):
        q0 = h * head_dim
        k0 = H + h * head_dim
        v0 = 2 * H + h * head_dim
        qh = qkv[:, q0:q0 + head_dim].astype(jnp.bfloat16)
        kh = qkv[:, k0:k0 + head_dim].astype(jnp.bfloat16)
        vh = qkv[:, v0:v0 + head_dim].astype(jnp.bfloat16)
        # Q·K^T as a transposed contraction (no explicit transpose).
        s = lax.dot_general(qh, kh, (((1,), (1,)), ((), ())),
                            preferred_element_type=jnp.float32) * scale
        s = s + mask
        s = s - jnp.max(s, axis=-1, keepdims=True)
        p = jnp.exp(s)
        p = p * pl.reciprocal(jnp.sum(p, axis=-1, keepdims=True), approx=True)
        ctx_ref[:, q0:q0 + head_dim] = jnp.dot(
            p.astype(jnp.bfloat16), vh, preferred_element_type=jnp.float32)

    ctx = ctx_ref[...].astype(jnp.bfloat16)                       # (S,H)

    # Output projection + residual + LayerNorm (f32 math).
    attn = jnp.dot(ctx, wo_ref[0], preferred_element_type=jnp.float32) + bo_ref[0]
    h1 = _layernorm_f32(attn + x_f32, ln1g_ref[0], ln1b_ref[0], eps)

    # FFN: dense -> gelu -> dense, residual + LayerNorm.
    # TODO(synk): HF RoBERTa uses exact (erf) GELU; the tanh approximation drifts slightly.
    ff = jnp.dot(h1.astype(jnp.bfloat16), w1_ref[0],
                 preferred_element_type=jnp.float32) + b1_ref[0]
    ff = jax.nn.gelu(ff, approximate=True).astype(jnp.bfloat16)
    ff2 = jnp.dot(ff, w2_ref[0], preferred_element_type=jnp.float32) + b2_ref[0]
    h2 = _layernorm_f32(ff2 + h1, ln2g_ref[0], ln2b_ref[0], eps)

    h_ref[...] = h2                                               # carry to next layer

    # ---- l == L-1: fused pooler + Dropout(eval=identity) + classifier + ReLU ----
    @pl.when(l == num_layers - 1)
    def _():
        cls = h2[0:1, :]                                          # (1,H) f32 [CLS] row
        pooled = jnp.tanh(jnp.dot(cls, wp_ref[...],
                                  preferred_element_type=jnp.float32) + bp_ref[...])
        # nn.Dropout(0.5) is identity in eval mode.
        # TODO(synk): training-mode dropout would use pltpu.prng_random_bits masking.
        logits = jnp.dot(pooled, wc_ref[...],
                         preferred_element_type=jnp.float32) + bc_ref[...]
        out_ref[0] = jnp.maximum(logits, 0.0)


# ----------------------------------------------------------------------------
# Forward pass (one pallas_call for the whole post-gather model)
# ----------------------------------------------------------------------------
def roberta_classifier_forward(params, input_ids, attention_mask, cfg):
    B, S = input_ids.shape
    H, F, L = cfg["hidden"], cfg["ffn"], cfg["layers"]

    # Embedding row gather stays in XLA (data-dependent); everything downstream is fused.
    # TODO(synk): an in-kernel gather via PrefetchScalarGridSpec + pl.Element row indexing
    # would remove this last XLA-materialized (B,S,H) tensor.
    word = params["word_emb"][input_ids]                           # (B,S,H) f32
    pos = params["pos_emb"][:S]                                    # (S,H)   f32
    seq_lens = jnp.sum(attention_mask, axis=1).astype(jnp.int32)   # (B,) right-pad lengths

    inv = dict(pipeline_mode=pl.Buffered(1))   # grid-invariant -> single-buffered

    def const(shp):                            # same block for every grid step
        return pl.BlockSpec(shp, lambda b, l, lens, _n=len(shp): (0,) * _n, **inv)

    def per_layer(shp):                        # stacked weights, selected by layer index
        return pl.BlockSpec((1,) + shp, lambda b, l, lens: (l,) + (0,) * len(shp))

    grid_spec = pltpu.PrefetchScalarGridSpec(
        num_scalar_prefetch=1,
        grid=(B, L),
        in_specs=[
            pl.BlockSpec((1, S, H), lambda b, l, lens: (b, 0, 0)),  # gathered word emb
            const((S, H)), const((1, H)),                           # pos_emb, type_emb
            const((1, H)), const((1, H)),                           # emb LN gamma, beta
            per_layer((H, 3 * H)), per_layer((1, 3 * H)),           # QKV
            per_layer((H, H)), per_layer((1, H)),                   # out proj
            per_layer((1, H)), per_layer((1, H)),                   # LN1
            per_layer((H, F)), per_layer((1, F)),                   # FFN up
            per_layer((F, H)), per_layer((1, H)),                   # FFN down
            per_layer((1, H)), per_layer((1, H)),                   # LN2
            const((H, H)), const((1, H)),                           # pooler
            const((H, LANE)), const((1, LANE)),                     # classifier (lane-padded)
        ],
        out_specs=pl.BlockSpec((1, 1, LANE), lambda b, l, lens: (b, 0, 0)),
        scratch_shapes=[pltpu.VMEM((S, H), jnp.float32),            # resident hidden state
                        pltpu.VMEM((S, H), jnp.float32)],           # attention context
    )

    logits_pad = pl.pallas_call(
        partial(_model_kernel, heads=cfg["heads"], head_dim=cfg["head_dim"],
                eps=LN_EPS, num_layers=L),
        out_shape=jax.ShapeDtypeStruct((B, 1, LANE), jnp.float32),
        grid_spec=grid_spec,
        compiler_params=pltpu.CompilerParams(
            dimension_semantics=("parallel", "arbitrary"),   # B across cores (v7x 2 TCs)
            vmem_limit_bytes=32 * 1024 * 1024,
        ),
    )(seq_lens, word, pos, params["type_emb"],
      params["emb_ln_g"], params["emb_ln_b"],
      params["wqkv"], params["bqkv"], params["wo"], params["bo"],
      params["ln1_g"], params["ln1_b"],
      params["w1"], params["b1"], params["w2"], params["b2"],
      params["ln2_g"], params["ln2_b"],
      params["pool_w"], params["pool_b"],
      params["cls_w_pad"], params["cls_b_pad"])

    return logits_pad[:, 0, :cfg["num_labels"]]


# ----------------------------------------------------------------------------
# Parameters (deterministic synthetic init; layer matmul weights bf16, stacked over L)
# ----------------------------------------------------------------------------
def init_params(key, cfg):
    def nrm(k, shape, dtype=jnp.bfloat16):
        return (jax.random.normal(k, shape, jnp.float32) * 0.02).astype(dtype)

    keys = iter(jax.random.split(key, 32))
    H, F, L, NL = cfg["hidden"], cfg["ffn"], cfg["layers"], cfg["num_labels"]
    return {
        "word_emb": nrm(next(keys), (cfg["vocab"], H), jnp.float32),
        "pos_emb": nrm(next(keys), (cfg["max_pos"], H), jnp.float32),
        "type_emb": nrm(next(keys), (1, H), jnp.float32),
        "emb_ln_g": jnp.ones((1, H), jnp.float32),
        "emb_ln_b": jnp.zeros((1, H), jnp.float32),
        # Per-layer weights stacked along a leading L axis (selected by the layer grid axis).
        "wqkv": nrm(next(keys), (L, H, 3 * H)),
        "bqkv": jnp.zeros((L, 1, 3 * H), jnp.float32),
        "wo": nrm(next(keys), (L, H, H)),
        "bo": jnp.zeros((L, 1, H), jnp.float32),
        "ln1_g": jnp.ones((L, 1, H), jnp.float32),
        "ln1_b": jnp.zeros((L, 1, H), jnp.float32),
        "w1": nrm(next(keys), (L, H, F)),
        "b1": jnp.zeros((L, 1, F), jnp.float32),
        "w2": nrm(next(keys), (L, F, H)),
        "b2": jnp.zeros((L, 1, H), jnp.float32),
        "ln2_g": jnp.ones((L, 1, H), jnp.float32),
        "ln2_b": jnp.zeros((L, 1, H), jnp.float32),
        # Pooler / classifier in f32 (matches the PyTorch f32 head).
        "pool_w": nrm(next(keys), (H, H), jnp.float32),
        "pool_b": jnp.zeros((1, H), jnp.float32),
        # Classifier weight padded to one full 128-lane tile; real logits live in cols [:NL].
        "cls_w_pad": jnp.zeros((H, LANE), jnp.float32).at[:, :NL].set(
            nrm(next(keys), (H, NL), jnp.float32)),
        "cls_b_pad": jnp.zeros((1, LANE), jnp.float32),
    }


if __name__ == "__main__":
    key = jax.random.PRNGKey(0)
    k_param, k_ids = jax.random.split(key)

    params = init_params(k_param, CFG)

    B, S = 2, 8
    input_ids = jax.random.randint(k_ids, (B, S), 0, CFG["vocab"], dtype=jnp.int32)
    attention_mask = jnp.ones((B, S), dtype=jnp.int32).at[1, 6:].set(0)  # 2nd row right-padded

    fwd = jax.jit(partial(roberta_classifier_forward, cfg=CFG))
    logits = fwd(params, input_ids, attention_mask)
    logits = jax.block_until_ready(logits)

    assert logits.shape == (B, CFG["num_labels"])
    assert bool(jnp.all(jnp.isfinite(logits)))
    assert bool(jnp.all(logits >= 0.0))  # ReLU output
    print("KERNEL_OK")
</pallas_src>

<mosaic_0001>
module attributes {stable_mosaic.version = 11 : i64} {
  func.func @_model_kernel(%arg0: i32, %arg1: i32, %arg2: memref<2xi32, #tpu.memory_space<smem>>, %arg3: memref<1x8x32xf32, #tpu.memory_space<vmem>>, %arg4: memref<8x32xf32, #tpu.memory_space<vmem>>, %arg5: memref<1x32xf32, #tpu.memory_space<vmem>>, %arg6: memref<1x32xf32, #tpu.memory_space<vmem>>, %arg7: memref<1x32xf32, #tpu.memory_space<vmem>>, %arg8: memref<1x32x96xbf16, #tpu.memory_space<vmem>>, %arg9: memref<1x1x96xf32, #tpu.memory_space<vmem>>, %arg10: memref<1x32x32xbf16, #tpu.memory_space<vmem>>, %arg11: memref<1x1x32xf32, #tpu.memory_space<vmem>>, %arg12: memref<1x1x32xf32, #tpu.memory_space<vmem>>, %arg13: memref<1x1x32xf32, #tpu.memory_space<vmem>>, %arg14: memref<1x32x64xbf16, #tpu.memory_space<vmem>>, %arg15: memref<1x1x64xf32, #tpu.memory_space<vmem>>, %arg16: memref<1x64x32xbf16, #tpu.memory_space<vmem>>, %arg17: memref<1x1x32xf32, #tpu.memory_space<vmem>>, %arg18: memref<1x1x32xf32, #tpu.memory_space<vmem>>, %arg19: memref<1x1x32xf32, #tpu.memory_space<vmem>>, %arg20: memref<32x32xf32, #tpu.memory_space<vmem>>, %arg21: memref<1x32xf32, #tpu.memory_space<vmem>>, %arg22: memref<32x128xf32, #tpu.memory_space<vmem>>, %arg23: memref<1x128xf32, #tpu.memory_space<vmem>>, %arg24: memref<1x1x128xf32, #tpu.memory_space<vmem>>, %arg25: memref<8x32xf32, #tpu.memory_space<vmem>>, %arg26: memref<8x32xf32, #tpu.memory_space<vmem>>) attributes {dimension_semantics = [#tpu.dimension_semantics<parallel>, #tpu.dimension_semantics<arbitrary>], iteration_bounds = array<i64: 2, 2>, scalar_prefetch = 1 : i64, scratch_operands = 2 : i64, tpu.core_type = #tpu.core_type<tc>, window_params = [{transform_indices = @transform_0, window_bounds = array<i64: 1, 8, 32>}, {pipeline_mode = #tpu.pipeline_mode<synchronous>, transform_indices = @transform_1, window_bounds = array<i64: 8, 32>}, {pipeline_mode = #tpu.pipeline_mode<synchronous>, transform_indices = @transform_2, window_bounds = array<i64: 1, 32>}, {pipeline_mode = #tpu.pipeline_mode<synchronous>, transform_indices = @transform_3, window_bounds = array<i64: 1, 32>}, {pipeline_mode = #tpu.pipeline_mode<synchronous>, transform_indices = @transform_4, window_bounds = array<i64: 1, 32>}, {transform_indices = @transform_5, window_bounds = array<i64: 1, 32, 96>}, {transform_indices = @transform_6, window_bounds = array<i64: 1, 1, 96>}, {transform_indices = @transform_7, window_bounds = array<i64: 1, 32, 32>}, {transform_indices = @transform_8, window_bounds = array<i64: 1, 1, 32>}, {transform_indices = @transform_9, window_bounds = array<i64: 1, 1, 32>}, {transform_indices = @transform_10, window_bounds = array<i64: 1, 1, 32>}, {transform_indices = @transform_11, window_bounds = array<i64: 1, 32, 64>}, {transform_indices = @transform_12, window_bounds = array<i64: 1, 1, 64>}, {transform_indices = @transform_13, window_bounds = array<i64: 1, 64, 32>}, {transform_indices = @transform_14, window_bounds = array<i64: 1, 1, 32>}, {transform_indices = @transform_15, window_bounds = array<i64: 1, 1, 32>}, {transform_indices = @transform_16, window_bounds = array<i64: 1, 1, 32>}, {pipeline_mode = #tpu.pipeline_mode<synchronous>, transform_indices = @transform_17, window_bounds = array<i64: 32, 32>}, {pipeline_mode = #tpu.pipeline_mode<synchronous>, transform_indices = @transform_18, window_bounds = array<i64: 1, 32>}, {pipeline_mode = #tpu.pipeline_mode<synchronous>, transform_indices = @transform_19, window_bounds = array<i64: 32, 128>}, {pipeline_mode = #tpu.pipeline_mode<synchronous>, transform_indices = @transform_20, window_bounds = array<i64: 1, 128>}, {transform_indices = @transform_21, window_bounds = array<i64: 1, 1, 128>}]} {
    %c0_i32 = arith.constant 0 : i32
    %0 = arith.cmpi eq, %arg1, %c0_i32 : i32
    %1 = arith.extui %0 : i1 to i32
    %c0_i32_0 = arith.constant 0 : i32
    %2 = arith.cmpi ne, %1, %c0_i32_0 : i32
    scf.if %2 {
      %c0_87 = arith.constant 0 : index
      %c0_88 = arith.constant 0 : index
      %c0_89 = arith.constant 0 : index
      %216 = vector.load %arg3[%c0_87, %c0_88, %c0_89] : memref<1x8x32xf32, #tpu.memory_space<vmem>>, vector<1x8x32xf32>
      %217 = vector.shape_cast %216 : vector<1x8x32xf32> to vector<8x32xf32>
      %c0_90 = arith.constant 0 : index
      %c0_91 = arith.constant 0 : index
      %218 = vector.load %arg4[%c0_90, %c0_91] : memref<8x32xf32, #tpu.memory_space<vmem>>, vector<8x32xf32>
      %219 = arith.addf %217, %218 : vector<8x32xf32>
      %c0_92 = arith.constant 0 : index
      %c0_93 = arith.constant 0 : index
      %220 = vector.load %arg5[%c0_92, %c0_93] : memref<1x32xf32, #tpu.memory_space<vmem>>, vector<1x32xf32>
      %221 = vector.broadcast %220 : vector<1x32xf32> to vector<8x32xf32>
      %222 = arith.addf %219, %221 : vector<8x32xf32>
      %c0_94 = arith.constant 0 : index
      %c0_95 = arith.constant 0 : index
      %223 = vector.load %arg6[%c0_94, %c0_95] : memref<1x32xf32, #tpu.memory_space<vmem>>, vector<1x32xf32>
      %c0_96 = arith.constant 0 : index
      %c0_97 = arith.constant 0 : index
      %224 = vector.load %arg7[%c0_96, %c0_97] : memref<1x32xf32, #tpu.memory_space<vmem>>, vector<1x32xf32>
      %cst_98 = arith.constant dense<0.000000e+00> : vector<8xf32>
      %225 = vector.multi_reduction <add>, %222, %cst_98 [1] : vector<8x32xf32> to vector<8xf32>
      %226 = vector.shape_cast %225 : vector<8xf32> to vector<8x1xf32>
      %cst_99 = arith.constant 3.200000e+01 : f32
      %227 = vector.broadcast %cst_99 : f32 to vector<8x1xf32>
      %228 = arith.divf %226, %227 : vector<8x1xf32>
      %229 = vector.broadcast %228 : vector<8x1xf32> to vector<8x32xf32>
      %230 = arith.subf %222, %229 : vector<8x32xf32>
      %231 = vector.broadcast %228 : vector<8x1xf32> to vector<8x32xf32>
      %232 = arith.subf %222, %231 : vector<8x32xf32>
      %233 = arith.mulf %230, %232 : vector<8x32xf32>
      %cst_100 = arith.constant dense<0.000000e+00> : vector<8xf32>
      %234 = vector.multi_reduction <add>, %233, %cst_100 [1] : vector<8x32xf32> to vector<8xf32>
      %235 = vector.shape_cast %234 : vector<8xf32> to vector<8x1xf32>
      %cst_101 = arith.constant 3.200000e+01 : f32
      %236 = vector.broadcast %cst_101 : f32 to vector<8x1xf32>
      %237 = arith.divf %235, %236 : vector<8x1xf32>
      %238 = vector.broadcast %228 : vector<8x1xf32> to vector<8x32xf32>
      %239 = arith.subf %222, %238 : vector<8x32xf32>
      %cst_102 = arith.constant 9.99999974E-6 : f32
      %240 = vector.broadcast %cst_102 : f32 to vector<8x1xf32>
      %241 = arith.addf %237, %240 : vector<8x1xf32>
      %242 = math.rsqrt %241 : vector<8x1xf32>
      %243 = vector.broadcast %242 : vector<8x1xf32> to vector<8x32xf32>
      %244 = arith.mulf %239, %243 : vector<8x32xf32>
      %245 = vector.broadcast %223 : vector<1x32xf32> to vector<8x32xf32>
      %246 = arith.mulf %244, %245 : vector<8x32xf32>
      %247 = vector.broadcast %224 : vector<1x32xf32> to vector<8x32xf32>
      %248 = arith.addf %246, %247 : vector<8x32xf32>
      %c0_103 = arith.constant 0 : index
      %c0_104 = arith.constant 0 : index
      %249 = vector.load %arg25[%c0_103, %c0_104] : memref<8x32xf32, #tpu.memory_space<vmem>>, vector<8x32xf32>
      tpu.vector_store %arg25[%c0_103, %c0_104], %248 {strides = array<i32>} : memref<8x32xf32, #tpu.memory_space<vmem>>, vector<8x32xf32>,
    } else {
    }
    %3 = arith.index_cast %arg0 : i32 to index
    %4 = memref.load %arg2[%3] : memref<2xi32, #tpu.memory_space<smem>>
    %5 = tpu.iota {dimensions = array<i32: 1>} : vector<1x8xi32>
    %6 = vector.broadcast %4 : i32 to vector<1x8xi32>
    %7 = arith.cmpi slt, %5, %6 : vector<1x8xi32>
    %cst = arith.constant 0.000000e+00 : f32
    %cst_1 = arith.constant -1.000000e+09 : f32
    %8 = vector.broadcast %cst : f32 to vector<1x8xf32>
    %9 = vector.broadcast %cst_1 : f32 to vector<1x8xf32>
    %10 = arith.select %7, %8, %9 : vector<1x8xi1>, vector<1x8xf32>
    %c0 = arith.constant 0 : index
    %c0_2 = arith.constant 0 : index
    %11 = vector.load %arg25[%c0, %c0_2] : memref<8x32xf32, #tpu.memory_space<vmem>>, vector<8x32xf32>
    %12 = arith.truncf %11 : vector<8x32xf32> to vector<8x32xbf16>
    %c0_3 = arith.constant 0 : index
    %c0_4 = arith.constant 0 : index
    %c0_5 = arith.constant 0 : index
    %13 = vector.load %arg8[%c0_3, %c0_4, %c0_5] : memref<1x32x96xbf16, #tpu.memory_space<vmem>>, vector<1x32x96xbf16>
    %14 = vector.shape_cast %13 : vector<1x32x96xbf16> to vector<32x96xbf16>
    %cst_6 = arith.constant dense<0.000000e+00> : vector<8x96xf32>
    %15 = tpu.matmul %12, %14, %cst_6 {dimension_numbers = #tpu.dot_dimension_numbers<[1], [0], [0], [1], [0, 0, 1, 1], [], []>} : vector<8x32xbf16>, vector<32x96xbf16>, vector<8x96xf32> -> vector<8x96xf32>
    %c0_7 = arith.constant 0 : index
    %c0_8 = arith.constant 0 : index
    %c0_9 = arith.constant 0 : index
    %16 = vector.load %arg9[%c0_7, %c0_8, %c0_9] : memref<1x1x96xf32, #tpu.memory_space<vmem>>, vector<1x1x96xf32>
    %17 = vector.shape_cast %16 : vector<1x1x96xf32> to vector<1x96xf32>
    %18 = vector.broadcast %17 : vector<1x96xf32> to vector<8x96xf32>
    %19 = arith.addf %15, %18 : vector<8x96xf32>
    %20 = vector.extract_strided_slice %19 {offsets = [0, 0], sizes = [8, 8], strides = [1, 1]} : vector<8x96xf32> to vector<8x8xf32>
    %21 = arith.truncf %20 : vector<8x8xf32> to vector<8x8xbf16>
    %22 = vector.extract_strided_slice %19 {offsets = [0, 32], sizes = [8, 8], strides = [1, 1]} : vector<8x96xf32> to vector<8x8xf32>
    %23 = arith.truncf %22 : vector<8x8xf32> to vector<8x8xbf16>
    %24 = vector.extract_strided_slice %19 {offsets = [0, 64], sizes = [8, 8], strides = [1, 1]} : vector<8x96xf32> to vector<8x8xf32>
    %25 = arith.truncf %24 : vector<8x8xf32> to vector<8x8xbf16>
    %cst_10 = arith.constant dense<0.000000e+00> : vector<8x8xf32>
    %26 = tpu.matmul %21, %23, %cst_10 {dimension_numbers = #tpu.dot_dimension_numbers<[1], [1], [0], [0], [0, 0, 1, 0], [], []>} : vector<8x8xbf16>, vector<8x8xbf16>, vector<8x8xf32> -> vector<8x8xf32>
    %cst_11 = arith.constant 0.353553385 : f32
    %27 = vector.broadcast %cst_11 : f32 to vector<8x8xf32>
    %28 = arith.mulf %26, %27 : vector<8x8xf32>
    %29 = vector.broadcast %10 : vector<1x8xf32> to vector<8x8xf32>
    %30 = arith.addf %28, %29 : vector<8x8xf32>
    %cst_12 = arith.constant dense<0xFF800000> : vector<8xf32>
    %31 = vector.multi_reduction <maximumf>, %30, %cst_12 [1] : vector<8x8xf32> to vector<8xf32>
    %32 = vector.shape_cast %31 : vector<8xf32> to vector<8x1xf32>
    %33 = vector.broadcast %32 : vector<8x1xf32> to vector<8x8xf32>
    %34 = arith.subf %30, %33 : vector<8x8xf32>
    %35 = math.exp %34 : vector<8x8xf32>
    %cst_13 = arith.constant dense<0.000000e+00> : vector<8xf32>
    %36 = vector.multi_reduction <add>, %35, %cst_13 [1] : vector<8x8xf32> to vector<8xf32>
    %37 = vector.shape_cast %36 : vector<8xf32> to vector<8x1xf32>
    %38 = tpu.reciprocal %37 {approx = true} : vector<8x1xf32> -> vector<8x1xf32>
    %39 = vector.broadcast %38 : vector<8x1xf32> to vector<8x8xf32>
    %40 = arith.mulf %35, %39 : vector<8x8xf32>
    %41 = arith.truncf %40 : vector<8x8xf32> to vector<8x8xbf16>
    %cst_14 = arith.constant dense<0.000000e+00> : vector<8x8xf32>
    %42 = tpu.matmul %41, %25, %cst_14 {dimension_numbers = #tpu.dot_dimension_numbers<[1], [0], [0], [1], [0, 0, 1, 1], [], []>} : vector<8x8xbf16>, vector<8x8xbf16>, vector<8x8xf32> -> vector<8x8xf32>
    %c0_15 = arith.constant 0 : index
    %c0_16 = arith.constant 0 : index
    %43 = vector.load %arg26[%c0_15, %c0_16] : memref<8x32xf32, #tpu.memory_space<vmem>>, vector<8x8xf32>
    tpu.vector_store %arg26[%c0_15, %c0_16], %42 {strides = array<i32>} : memref<8x32xf32, #tpu.memory_space<vmem>>, vector<8x8xf32>,
    %44 = vector.extract_strided_slice %19 {offsets = [0, 8], sizes = [8, 8], strides = [1, 1]} : vector<8x96xf32> to vector<8x8xf32>
    %45 = arith.truncf %44 : vector<8x8xf32> to vector<8x8xbf16>
    %46 = vector.extract_strided_slice %19 {offsets = [0, 40], sizes = [8, 8], strides = [1, 1]} : vector<8x96xf32> to vector<8x8xf32>
    %47 = arith.truncf %46 : vector<8x8xf32> to vector<8x8xbf16>
    %48 = vector.extract_strided_slice %19 {offsets = [0, 72], sizes = [8, 8], strides = [1, 1]} : vector<8x96xf32> to vector<8x8xf32>
    %49 = arith.truncf %48 : vector<8x8xf32> to vector<8x8xbf16>
    %cst_17 = arith.constant dense<0.000000e+00> : vector<8x8xf32>
    %50 = tpu.matmul %45, %47, %cst_17 {dimension_numbers = #tpu.dot_dimension_numbers<[1], [1], [0], [0], [0, 0, 1, 0], [], []>} : vector<8x8xbf16>, vector<8x8xbf16>, vector<8x8xf32> -> vector<8x8xf32>
    %cst_18 = arith.constant 0.353553385 : f32
    %51 = vector.broadcast %cst_18 : f32 to vector<8x8xf32>
    %52 = arith.mulf %50, %51 : vector<8x8xf32>
    %53 = vector.broadcast %10 : vector<1x8xf32> to vector<8x8xf32>
    %54 = arith.addf %52, %53 : vector<8x8xf32>
    %cst_19 = arith.constant dense<0xFF800000> : vector<8xf32>
    %55 = vector.multi_reduction <maximumf>, %54, %cst_19 [1] : vector<8x8xf32> to vector<8xf32>
    %56 = vector.shape_cast %55 : vector<8xf32> to vector<8x1xf32>
    %57 = vector.broadcast %56 : vector<8x1xf32> to vector<8x8xf32>
    %58 = arith.subf %54, %57 : vector<8x8xf32>
    %59 = math.exp %58 : vector<8x8xf32>
    %cst_20 = arith.constant dense<0.000000e+00> : vector<8xf32>
    %60 = vector.multi_reduction <add>, %59, %cst_20 [1] : vector<8x8xf32> to vector<8xf32>
    %61 = vector.shape_cast %60 : vector<8xf32> to vector<8x1xf32>
    %62 = tpu.reciprocal %61 {approx = true} : vector<8x1xf32> -> vector<8x1xf32>
    %63 = vector.broadcast %62 : vector<8x1xf32> to vector<8x8xf32>
    %64 = arith.mulf %59, %63 : vector<8x8xf32>
    %65 = arith.truncf %64 : vector<8x8xf32> to vector<8x8xbf16>
    %cst_21 = arith.constant dense<0.000000e+00> : vector<8x8xf32>
    %66 = tpu.matmul %65, %49, %cst_21 {dimension_numbers = #tpu.dot_dimension_numbers<[1], [0], [0], [1], [0, 0, 1, 1], [], []>} : vector<8x8xbf16>, vector<8x8xbf16>, vector<8x8xf32> -> vector<8x8xf32>
    %c0_22 = arith.constant 0 : index
    %c8 = arith.constant 8 : index
    %67 = vector.load %arg26[%c0_22, %c8] : memref<8x32xf32, #tpu.memory_space<vmem>>, vector<8x8xf32>
    tpu.vector_store %arg26[%c0_22, %c8], %66 {strides = array<i32>} : memref<8x32xf32, #tpu.memory_space<vmem>>, vector<8x8xf32>,
    %68 = vector.extract_strided_slice %19 {offsets = [0, 16], sizes = [8, 8], strides = [1, 1]} : vector<8x96xf32> to vector<8x8xf32>
    %69 = arith.truncf %68 : vector<8x8xf32> to vector<8x8xbf16>
    %70 = vector.extract_strided_slice %19 {offsets = [0, 48], sizes = [8, 8], strides = [1, 1]} : vector<8x96xf32> to vector<8x8xf32>
    %71 = arith.truncf %70 : vector<8x8xf32> to vector<8x8xbf16>
    %72 = vector.extract_strided_slice %19 {offsets = [0, 80], sizes = [8, 8], strides = [1, 1]} : vector<8x96xf32> to vector<8x8xf32>
    %73 = arith.truncf %72 : vector<8x8xf32> to vector<8x8xbf16>
    %cst_23 = arith.constant dense<0.000000e+00> : vector<8x8xf32>
    %74 = tpu.matmul %69, %71, %cst_23 {dimension_numbers = #tpu.dot_dimension_numbers<[1], [1], [0], [0], [0, 0, 1, 0], [], []>} : vector<8x8xbf16>, vector<8x8xbf16>, vector<8x8xf32> -> vector<8x8xf32>
    %cst_24 = arith.constant 0.353553385 : f32
    %75 = vector.broadcast %cst_24 : f32 to vector<8x8xf32>
    %76 = arith.mulf %74, %75 : vector<8x8xf32>
    %77 = vector.broadcast %10 : vector<1x8xf32> to vector<8x8xf32>
    %78 = arith.addf %76, %77 : vector<8x8xf32>
    %cst_25 = arith.constant dense<0xFF800000> : vector<8xf32>
    %79 = vector.multi_reduction <maximumf>, %78, %cst_25 [1] : vector<8x8xf32> to vector<8xf32>
    %80 = vector.shape_cast %79 : vector<8xf32> to vector<8x1xf32>
    %81 = vector.broadcast %80 : vector<8x1xf32> to vector<8x8xf32>
    %82 = arith.subf %78, %81 : vector<8x8xf32>
    %83 = math.exp %82 : vector<8x8xf32>
    %cst_26 = arith.constant dense<0.000000e+00> : vector<8xf32>
    %84 = vector.multi_reduction <add>, %83, %cst_26 [1] : vector<8x8xf32> to vector<8xf32>
    %85 = vector.shape_cast %84 : vector<8xf32> to vector<8x1xf32>
    %86 = tpu.reciprocal %85 {approx = true} : vector<8x1xf32> -> vector<8x1xf32>
    %87 = vector.broadcast %86 : vector<8x1xf32> to vector<8x8xf32>
    %88 = arith.mulf %83, %87 : vector<8x8xf32>
    %89 = arith.truncf %88 : vector<8x8xf32> to vector<8x8xbf16>
    %cst_27 = arith.constant dense<0.000000e+00> : vector<8x8xf32>
    %90 = tpu.matmul %89, %73, %cst_27 {dimension_numbers = #tpu.dot_dimension_numbers<[1], [0], [0], [1], [0, 0, 1, 1], [], []>} : vector<8x8xbf16>, vector<8x8xbf16>, vector<8x8xf32> -> vector<8x8xf32>
    %c0_28 = arith.constant 0 : index
    %c16 = arith.constant 16 : index
    %91 = vector.load %arg26[%c0_28, %c16] : memref<8x32xf32, #tpu.memory_space<vmem>>, vector<8x8xf32>
    tpu.vector_store %arg26[%c0_28, %c16], %90 {strides = array<i32>} : memref<8x32xf32, #tpu.memory_space<vmem>>, vector<8x8xf32>,
    %92 = vector.extract_strided_slice %19 {offsets = [0, 24], sizes = [8, 8], strides = [1, 1]} : vector<8x96xf32> to vector<8x8xf32>
    %93 = arith.truncf %92 : vector<8x8xf32> to vector<8x8xbf16>
    %94 = vector.extract_strided_slice %19 {offsets = [0, 56], sizes = [8, 8], strides = [1, 1]} : vector<8x96xf32> to vector<8x8xf32>
    %95 = arith.truncf %94 : vector<8x8xf32> to vector<8x8xbf16>
    %96 = vector.extract_strided_slice %19 {offsets = [0, 88], sizes = [8, 8], strides = [1, 1]} : vector<8x96xf32> to vector<8x8xf32>
    %97 = arith.truncf %96 : vector<8x8xf32> to vector<8x8xbf16>
    %cst_29 = arith.constant dense<0.000000e+00> : vector<8x8xf32>
    %98 = tpu.matmul %93, %95, %cst_29 {dimension_numbers = #tpu.dot_dimension_numbers<[1], [1], [0], [0], [0, 0, 1, 0], [], []>} : vector<8x8xbf16>, vector<8x8xbf16>, vector<8x8xf32> -> vector<8x8xf32>
    %cst_30 = arith.constant 0.353553385 : f32
    %99 = vector.broadcast %cst_30 : f32 to vector<8x8xf32>
    %100 = arith.mulf %98, %99 : vector<8x8xf32>
    %101 = vector.broadcast %10 : vector<1x8xf32> to vector<8x8xf32>
    %102 = arith.addf %100, %101 : vector<8x8xf32>
    %cst_31 = arith.constant dense<0xFF800000> : vector<8xf32>
    %103 = vector.multi_reduction <maximumf>, %102, %cst_31 [1] : vector<8x8xf32> to vector<8xf32>
    %104 = vector.shape_cast %103 : vector<8xf32> to vector<8x1xf32>
    %105 = vector.broadcast %104 : vector<8x1xf32> to vector<8x8xf32>
    %106 = arith.subf %102, %105 : vector<8x8xf32>
    %107 = math.exp %106 : vector<8x8xf32>
    %cst_32 = arith.constant dense<0.000000e+00> : vector<8xf32>
    %108 = vector.multi_reduction <add>, %107, %cst_32 [1] : vector<8x8xf32> to vector<8xf32>
    %109 = vector.shape_cast %108 : vector<8xf32> to vector<8x1xf32>
    %110 = tpu.reciprocal %109 {approx = true} : vector<8x1xf32> -> vector<8x1xf32>
    %111 = vector.broadcast %110 : vector<8x1xf32> to vector<8x8xf32>
    %112 = arith.mulf %107, %111 : vector<8x8xf32>
    %113 = arith.truncf %112 : vector<8x8xf32> to vector<8x8xbf16>
    %cst_33 = arith.constant dense<0.000000e+00> : vector<8x8xf32>
    %114 = tpu.matmul %113, %97, %cst_33 {dimension_numbers = #tpu.dot_dimension_numbers<[1], [0], [0], [1], [0, 0, 1, 1], [], []>} : vector<8x8xbf16>, vector<8x8xbf16>, vector<8x8xf32> -> vector<8x8xf32>
    %c0_34 = arith.constant 0 : index
    %c24 = arith.constant 24 : index
    %115 = vector.load %arg26[%c0_34, %c24] : memref<8x32xf32, #tpu.memory_space<vmem>>, vector<8x8xf32>
    tpu.vector_store %arg26[%c0_34, %c24], %114 {strides = array<i32>} : memref<8x32xf32, #tpu.memory_space<vmem>>, vector<8x8xf32>,
    %c0_35 = arith.constant 0 : index
    %c0_36 = arith.constant 0 : index
    %116 = vector.load %arg26[%c0_35, %c0_36] : memref<8x32xf32, #tpu.memory_space<vmem>>, vector<8x32xf32>
    %117 = arith.truncf %116 : vector<8x32xf32> to vector<8x32xbf16>
    %c0_37 = arith.constant 0 : index
    %c0_38 = arith.constant 0 : index
    %c0_39 = arith.constant 0 : index
    %118 = vector.load %arg10[%c0_37, %c0_38, %c0_39] : memref<1x32x32xbf16, #tpu.memory_space<vmem>>, vector<1x32x32xbf16>
    %119 = vector.shape_cast %118 : vector<1x32x32xbf16> to vector<32x32xbf16>
    %cst_40 = arith.constant dense<0.000000e+00> : vector<8x32xf32>
    %120 = tpu.matmul %117, %119, %cst_40 {dimension_numbers = #tpu.dot_dimension_numbers<[1], [0], [0], [1], [0, 0, 1, 1], [], []>} : vector<8x32xbf16>, vector<32x32xbf16>, vector<8x32xf32> -> vector<8x32xf32>
    %c0_41 = arith.constant 0 : index
    %c0_42 = arith.constant 0 : index
    %c0_43 = arith.constant 0 : index
    %121 = vector.load %arg11[%c0_41, %c0_42, %c0_43] : memref<1x1x32xf32, #tpu.memory_space<vmem>>, vector<1x1x32xf32>
    %122 = vector.shape_cast %121 : vector<1x1x32xf32> to vector<1x32xf32>
    %123 = vector.broadcast %122 : vector<1x32xf32> to vector<8x32xf32>
    %124 = arith.addf %120, %123 : vector<8x32xf32>
    %125 = arith.addf %124, %11 : vector<8x32xf32>
    %c0_44 = arith.constant 0 : index
    %c0_45 = arith.constant 0 : index
    %c0_46 = arith.constant 0 : index
    %126 = vector.load %arg12[%c0_44, %c0_45, %c0_46] : memref<1x1x32xf32, #tpu.memory_space<vmem>>, vector<1x1x32xf32>
    %127 = vector.shape_cast %126 : vector<1x1x32xf32> to vector<1x32xf32>
    %c0_47 = arith.constant 0 : index
    %c0_48 = arith.constant 0 : index
    %c0_49 = arith.constant 0 : index
    %128 = vector.load %arg13[%c0_47, %c0_48, %c0_49] : memref<1x1x32xf32, #tpu.memory_space<vmem>>, vector<1x1x32xf32>
    %129 = vector.shape_cast %128 : vector<1x1x32xf32> to vector<1x32xf32>
    %cst_50 = arith.constant dense<0.000000e+00> : vector<8xf32>
    %130 = vector.multi_reduction <add>, %125, %cst_50 [1] : vector<8x32xf32> to vector<8xf32>
    %131 = vector.shape_cast %130 : vector<8xf32> to vector<8x1xf32>
    %cst_51 = arith.constant 3.200000e+01 : f32
    %132 = vector.broadcast %cst_51 : f32 to vector<8x1xf32>
    %133 = arith.divf %131, %132 : vector<8x1xf32>
    %134 = vector.broadcast %133 : vector<8x1xf32> to vector<8x32xf32>
    %135 = arith.subf %125, %134 : vector<8x32xf32>
    %136 = vector.broadcast %133 : vector<8x1xf32> to vector<8x32xf32>
    %137 = arith.subf %125, %136 : vector<8x32xf32>
    %138 = arith.mulf %135, %137 : vector<8x32xf32>
    %cst_52 = arith.constant dense<0.000000e+00> : vector<8xf32>
    %139 = vector.multi_reduction <add>, %138, %cst_52 [1] : vector<8x32xf32> to vector<8xf32>
    %140 = vector.shape_cast %139 : vector<8xf32> to vector<8x1xf32>
    %cst_53 = arith.constant 3.200000e+01 : f32
    %141 = vector.broadcast %cst_53 : f32 to vector<8x1xf32>
    %142 = arith.divf %140, %141 : vector<8x1xf32>
    %143 = vector.broadcast %133 : vector<8x1xf32> to vector<8x32xf32>
    %144 = arith.subf %125, %143 : vector<8x32xf32>
    %cst_54 = arith.constant 9.99999974E-6 : f32
    %145 = vector.broadcast %cst_54 : f32 to vector<8x1xf32>
    %146 = arith.addf %142, %145 : vector<8x1xf32>
    %147 = math.rsqrt %146 : vector<8x1xf32>
    %148 = vector.broadcast %147 : vector<8x1xf32> to vector<8x32xf32>
    %149 = arith.mulf %144, %148 : vector<8x32xf32>
    %150 = vector.broadcast %127 : vector<1x32xf32> to vector<8x32xf32>
    %151 = arith.mulf %149, %150 : vector<8x32xf32>
    %152 = vector.broadcast %129 : vector<1x32xf32> to vector<8x32xf32>
    %153 = arith.addf %151, %152 : vector<8x32xf32>
    %154 = arith.truncf %153 : vector<8x32xf32> to vector<8x32xbf16>
    %c0_55 = arith.constant 0 : index
    %c0_56 = arith.constant 0 : index
    %c0_57 = arith.constant 0 : index
    %155 = vector.load %arg14[%c0_55, %c0_56, %c0_57] : memref<1x32x64xbf16, #tpu.memory_space<vmem>>, vector<1x32x64xbf16>
    %156 = vector.shape_cast %155 : vector<1x32x64xbf16> to vector<32x64xbf16>
    %cst_58 = arith.constant dense<0.000000e+00> : vector<8x64xf32>
    %157 = tpu.matmul %154, %156, %cst_58 {dimension_numbers = #tpu.dot_dimension_numbers<[1], [0], [0], [1], [0, 0, 1, 1], [], []>} : vector<8x32xbf16>, vector<32x64xbf16>, vector<8x64xf32> -> vector<8x64xf32>
    %c0_59 = arith.constant 0 : index
    %c0_60 = arith.constant 0 : index
    %c0_61 = arith.constant 0 : index
    %158 = vector.load %arg15[%c0_59, %c0_60, %c0_61] : memref<1x1x64xf32, #tpu.memory_space<vmem>>, vector<1x1x64xf32>
    %159 = vector.shape_cast %158 : vector<1x1x64xf32> to vector<1x64xf32>
    %160 = vector.broadcast %159 : vector<1x64xf32> to vector<8x64xf32>
    %161 = arith.addf %157, %160 : vector<8x64xf32>
    %162 = arith.mulf %161, %161 : vector<8x64xf32>
    %163 = arith.mulf %161, %162 : vector<8x64xf32>
    %cst_62 = arith.constant 4.471500e-02 : f32
    %164 = vector.broadcast %cst_62 : f32 to vector<8x64xf32>
    %165 = arith.mulf %164, %163 : vector<8x64xf32>
    %166 = arith.addf %161, %165 : vector<8x64xf32>
    %cst_63 = arith.constant 0.797884583 : f32
    %167 = vector.broadcast %cst_63 : f32 to vector<8x64xf32>
    %168 = arith.mulf %167, %166 : vector<8x64xf32>
    %169 = math.tanh %168 : vector<8x64xf32>
    %cst_64 = arith.constant 1.000000e+00 : f32
    %170 = vector.broadcast %cst_64 : f32 to vector<8x64xf32>
    %171 = arith.addf %170, %169 : vector<8x64xf32>
    %cst_65 = arith.constant 5.000000e-01 : f32
    %172 = vector.broadcast %cst_65 : f32 to vector<8x64xf32>
    %173 = arith.mulf %172, %171 : vector<8x64xf32>
    %174 = arith.mulf %161, %173 : vector<8x64xf32>
    %175 = arith.truncf %174 : vector<8x64xf32> to vector<8x64xbf16>
    %c0_66 = arith.constant 0 : index
    %c0_67 = arith.constant 0 : index
    %c0_68 = arith.constant 0 : index
    %176 = vector.load %arg16[%c0_66, %c0_67, %c0_68] : memref<1x64x32xbf16, #tpu.memory_space<vmem>>, vector<1x64x32xbf16>
    %177 = vector.shape_cast %176 : vector<1x64x32xbf16> to vector<64x32xbf16>
    %cst_69 = arith.constant dense<0.000000e+00> : vector<8x32xf32>
    %178 = tpu.matmul %175, %177, %cst_69 {dimension_numbers = #tpu.dot_dimension_numbers<[1], [0], [0], [1], [0, 0, 1, 1], [], []>} : vector<8x64xbf16>, vector<64x32xbf16>, vector<8x32xf32> -> vector<8x32xf32>
    %c0_70 = arith.constant 0 : index
    %c0_71 = arith.constant 0 : index
    %c0_72 = arith.constant 0 : index
    %179 = vector.load %arg17[%c0_70, %c0_71, %c0_72] : memref<1x1x32xf32, #tpu.memory_space<vmem>>, vector<1x1x32xf32>
    %180 = vector.shape_cast %179 : vector<1x1x32xf32> to vector<1x32xf32>
    %181 = vector.broadcast %180 : vector<1x32xf32> to vector<8x32xf32>
    %182 = arith.addf %178, %181 : vector<8x32xf32>
    %183 = arith.addf %182, %153 : vector<8x32xf32>
    %c0_73 = arith.constant 0 : index
    %c0_74 = arith.constant 0 : index
    %c0_75 = arith.constant 0 : index
    %184 = vector.load %arg18[%c0_73, %c0_74, %c0_75] : memref<1x1x32xf32, #tpu.memory_space<vmem>>, vector<1x1x32xf32>
    %185 = vector.shape_cast %184 : vector<1x1x32xf32> to vector<1x32xf32>
    %c0_76 = arith.constant 0 : index
    %c0_77 = arith.constant 0 : index
    %c0_78 = arith.constant 0 : index
    %186 = vector.load %arg19[%c0_76, %c0_77, %c0_78] : memref<1x1x32xf32, #tpu.memory_space<vmem>>, vector<1x1x32xf32>
    %187 = vector.shape_cast %186 : vector<1x1x32xf32> to vector<1x32xf32>
    %cst_79 = arith.constant dense<0.000000e+00> : vector<8xf32>
    %188 = vector.multi_reduction <add>, %183, %cst_79 [1] : vector<8x32xf32> to vector<8xf32>
    %189 = vector.shape_cast %188 : vector<8xf32> to vector<8x1xf32>
    %cst_80 = arith.constant 3.200000e+01 : f32
    %190 = vector.broadcast %cst_80 : f32 to vector<8x1xf32>
    %191 = arith.divf %189, %190 : vector<8x1xf32>
    %192 = vector.broadcast %191 : vector<8x1xf32> to vector<8x32xf32>
    %193 = arith.subf %183, %192 : vector<8x32xf32>
    %194 = vector.broadcast %191 : vector<8x1xf32> to vector<8x32xf32>
    %195 = arith.subf %183, %194 : vector<8x32xf32>
    %196 = arith.mulf %193, %195 : vector<8x32xf32>
    %cst_81 = arith.constant dense<0.000000e+00> : vector<8xf32>
    %197 = vector.multi_reduction <add>, %196, %cst_81 [1] : vector<8x32xf32> to vector<8xf32>
    %198 = vector.shape_cast %197 : vector<8xf32> to vector<8x1xf32>
    %cst_82 = arith.constant 3.200000e+01 : f32
    %199 = vector.broadcast %cst_82 : f32 to vector<8x1xf32>
    %200 = arith.divf %198, %199 : vector<8x1xf32>
    %201 = vector.broadcast %191 : vector<8x1xf32> to vector<8x32xf32>
    %202 = arith.subf %183, %201 : vector<8x32xf32>
    %cst_83 = arith.constant 9.99999974E-6 : f32
    %203 = vector.broadcast %cst_83 : f32 to vector<8x1xf32>
    %204 = arith.addf %200, %203 : vector<8x1xf32>
    %205 = math.rsqrt %204 : vector<8x1xf32>
    %206 = vector.broadcast %205 : vector<8x1xf32> to vector<8x32xf32>
    %207 = arith.mulf %202, %206 : vector<8x32xf32>
    %208 = vector.broadcast %185 : vector<1x32xf32> to vector<8x32xf32>
    %209 = arith.mulf %207, %208 : vector<8x32xf32>
    %210 = vector.broadcast %187 : vector<1x32xf32> to vector<8x32xf32>
    %211 = arith.addf %209, %210 : vector<8x32xf32>
    %c0_84 = arith.constant 0 : index
    %c0_85 = arith.constant 0 : index
    %212 = vector.load %arg25[%c0_84, %c0_85] : memref<8x32xf32, #tpu.memory_space<vmem>>, vector<8x32xf32>
    tpu.vector_store %arg25[%c0_84, %c0_85], %211 {strides = array<i32>} : memref<8x32xf32, #tpu.memory_space<vmem>>, vector<8x32xf32>,
    %c1_i32 = arith.constant 1 : i32
    %213 = arith.cmpi eq, %arg1, %c1_i32 : i32
    %214 = arith.extui %213 : i1 to i32
    %c0_i32_86 = arith.constant 0 : i32
    %215 = arith.cmpi ne, %214, %c0_i32_86 : i32
    scf.if %215 {
      %216 = vector.extract_strided_slice %211 {offsets = [0, 0], sizes = [1, 32], strides = [1, 1]} : vector<8x32xf32> to vector<1x32xf32>
      %c0_87 = arith.constant 0 : index
      %c0_88 = arith.constant 0 : index
      %217 = vector.load %arg20[%c0_87, %c0_88] : memref<32x32xf32, #tpu.memory_space<vmem>>, vector<32x32xf32>
      %cst_89 = arith.constant dense<0.000000e+00> : vector<1x32xf32>
      %218 = tpu.matmul %216, %217, %cst_89 {dimension_numbers = #tpu.dot_dimension_numbers<[1], [0], [0], [1], [0, 0, 1, 1], [], []>} : vector<1x32xf32>, vector<32x32xf32>, vector<1x32xf32> -> vector<1x32xf32>
      %c0_90 = arith.constant 0 : index
      %c0_91 = arith.constant 0 : index
      %219 = vector.load %arg21[%c0_90, %c0_91] : memref<1x32xf32, #tpu.memory_space<vmem>>, vector<1x32xf32>
      %220 = arith.addf %218, %219 : vector<1x32xf32>
      %221 = math.tanh %220 : vector<1x32xf32>
      %c0_92 = arith.constant 0 : index
      %c0_93 = arith.constant 0 : index
      %222 = vector.load %arg22[%c0_92, %c0_93] : memref<32x128xf32, #tpu.memory_space<vmem>>, vector<32x128xf32>
      %cst_94 = arith.constant dense<0.000000e+00> : vector<1x128xf32>
      %223 = tpu.matmul %221, %222, %cst_94 {dimension_numbers = #tpu.dot_dimension_numbers<[1], [0], [0], [1], [0, 0, 1, 1], [], []>} : vector<1x32xf32>, vector<32x128xf32>, vector<1x128xf32> -> vector<1x128xf32>
      %c0_95 = arith.constant 0 : index
      %c0_96 = arith.constant 0 : index
      %224 = vector.load %arg23[%c0_95, %c0_96] : memref<1x128xf32, #tpu.memory_space<vmem>>, vector<1x128xf32>
      %225 = arith.addf %223, %224 : vector<1x128xf32>
      %cst_97 = arith.constant 0.000000e+00 : f32
      %226 = vector.broadcast %cst_97 : f32 to vector<1x128xf32>
      %227 = arith.maximumf %225, %226 : vector<1x128xf32>
      %c0_98 = arith.constant 0 : index
      %c0_99 = arith.constant 0 : index
      %c0_100 = arith.constant 0 : index
      %228 = vector.load %arg24[%c0_98, %c0_99, %c0_100] : memref<1x1x128xf32, #tpu.memory_space<vmem>>, vector<1x1x128xf32>
      %229 = vector.shape_cast %228 : vector<1x1x128xf32> to vector<1x128xf32>
      %230 = vector.shape_cast %227 : vector<1x128xf32> to vector<1x1x128xf32>
      tpu.vector_store %arg24[%c0_98, %c0_99, %c0_100], %230 {strides = array<i32>} : memref<1x1x128xf32, #tpu.memory_space<vmem>>, vector<1x1x128xf32>,
    } else {
    }
    return
  }
  func.func @transform_0(%arg0: i32, %arg1: i32, %arg2: memref<2xi32, #tpu.memory_space<smem>>) -> (i32, i32, i32) {
    %c0_i32 = arith.constant 0 : i32
    %c0_i32_0 = arith.constant 0 : i32
    %c0_i32_1 = arith.constant 0 : i32
    return %arg0, %c0_i32, %c0_i32_0 : i32, i32, i32
  }
  func.func @transform_1(%arg0: i32, %arg1: i32, %arg2: memref<2xi32, #tpu.memory_space<smem>>) -> (i32, i32) {
    %c0_i32 = arith.constant 0 : i32
    %c0_i32_0 = arith.constant 0 : i32
    %c0_i32_1 = arith.constant 0 : i32
    return %c0_i32, %c0_i32_0 : i32, i32
  }
  func.func @transform_2(%arg0: i32, %arg1: i32, %arg2: memref<2xi32, #tpu.memory_space<smem>>) -> (i32, i32) {
    %c0_i32 = arith.constant 0 : i32
    %c0_i32_0 = arith.constant 0 : i32
    %c0_i32_1 = arith.constant 0 : i32
    return %c0_i32, %c0_i32_0 : i32, i32
  }
  func.func @transform_3(%arg0: i32, %arg1: i32, %arg2: memref<2xi32, #tpu.memory_space<smem>>) -> (i32, i32) {
    %c0_i32 = arith.constant 0 : i32
    %c0_i32_0 = arith.constant 0 : i32
    %c0_i32_1 = arith.constant 0 : i32
    return %c0_i32, %c0_i32_0 : i32, i32
  }
  func.func @transform_4(%arg0: i32, %arg1: i32, %arg2: memref<2xi32, #tpu.memory_space<smem>>) -> (i32, i32) {
    %c0_i32 = arith.constant 0 : i32
    %c0_i32_0 = arith.constant 0 : i32
    %c0_i32_1 = arith.constant 0 : i32
    return %c0_i32, %c0_i32_0 : i32, i32
  }
  func.func @transform_5(%arg0: i32, %arg1: i32, %arg2: memref<2xi32, #tpu.memory_space<smem>>) -> (i32, i32, i32) {
    %c0_i32 = arith.constant 0 : i32
    %c0_i32_0 = arith.constant 0 : i32
    %c0_i32_1 = arith.constant 0 : i32
    return %arg1, %c0_i32, %c0_i32_0 : i32, i32, i32
  }
  func.func @transform_6(%arg0: i32, %arg1: i32, %arg2: memref<2xi32, #tpu.memory_space<smem>>) -> (i32, i32, i32) {
    %c0_i32 = arith.constant 0 : i32
    %c0_i32_0 = arith.constant 0 : i32
    %c0_i32_1 = arith.constant 0 : i32
    return %arg1, %c0_i32, %c0_i32_0 : i32, i32, i32
  }
  func.func @transform_7(%arg0: i32, %arg1: i32, %arg2: memref<2xi32, #tpu.memory_space<smem>>) -> (i32, i32, i32) {
    %c0_i32 = arith.constant 0 : i32
    %c0_i32_0 = arith.constant 0 : i32
    %c0_i32_1 = arith.constant 0 : i32
    return %arg1, %c0_i32, %c0_i32_0 : i32, i32, i32
  }
  func.func @transform_8(%arg0: i32, %arg1: i32, %arg2: memref<2xi32, #tpu.memory_space<smem>>) -> (i32, i32, i32) {
    %c0_i32 = arith.constant 0 : i32
    %c0_i32_0 = arith.constant 0 : i32
    %c0_i32_1 = arith.constant 0 : i32
    return %arg1, %c0_i32, %c0_i32_0 : i32, i32, i32
  }
  func.func @transform_9(%arg0: i32, %arg1: i32, %arg2: memref<2xi32, #tpu.memory_space<smem>>) -> (i32, i32, i32) {
    %c0_i32 = arith.constant 0 : i32
    %c0_i32_0 = arith.constant 0 : i32
    %c0_i32_1 = arith.constant 0 : i32
    return %arg1, %c0_i32, %c0_i32_0 : i32, i32, i32
  }
  func.func @transform_10(%arg0: i32, %arg1: i32, %arg2: memref<2xi32, #tpu.memory_space<smem>>) -> (i32, i32, i32) {
    %c0_i32 = arith.constant 0 : i32
    %c0_i32_0 = arith.constant 0 : i32
    %c0_i32_1 = arith.constant 0 : i32
    return %arg1, %c0_i32, %c0_i32_0 : i32, i32, i32
  }
  func.func @transform_11(%arg0: i32, %arg1: i32, %arg2: memref<2xi32, #tpu.memory_space<smem>>) -> (i32, i32, i32) {
    %c0_i32 = arith.constant 0 : i32
    %c0_i32_0 = arith.constant 0 : i32
    %c0_i32_1 = arith.constant 0 : i32
    return %arg1, %c0_i32, %c0_i32_0 : i32, i32, i32
  }
  func.func @transform_12(%arg0: i32, %arg1: i32, %arg2: memref<2xi32, #tpu.memory_space<smem>>) -> (i32, i32, i32) {
    %c0_i32 = arith.constant 0 : i32
    %c0_i32_0 = arith.constant 0 : i32
    %c0_i32_1 = arith.constant 0 : i32
    return %arg1, %c0_i32, %c0_i32_0 : i32, i32, i32
  }
  func.func @transform_13(%arg0: i32, %arg1: i32, %arg2: memref<2xi32, #tpu.memory_space<smem>>) -> (i32, i32, i32) {
    %c0_i32 = arith.constant 0 : i32
    %c0_i32_0 = arith.constant 0 : i32
    %c0_i32_1 = arith.constant 0 : i32
    return %arg1, %c0_i32, %c0_i32_0 : i32, i32, i32
  }
  func.func @transform_14(%arg0: i32, %arg1: i32, %arg2: memref<2xi32, #tpu.memory_space<smem>>) -> (i32, i32, i32) {
    %c0_i32 = arith.constant 0 : i32
    %c0_i32_0 = arith.constant 0 : i32
    %c0_i32_1 = arith.constant 0 : i32
    return %arg1, %c0_i32, %c0_i32_0 : i32, i32, i32
  }
  func.func @transform_15(%arg0: i32, %arg1: i32, %arg2: memref<2xi32, #tpu.memory_space<smem>>) -> (i32, i32, i32) {
    %c0_i32 = arith.constant 0 : i32
    %c0_i32_0 = arith.constant 0 : i32
    %c0_i32_1 = arith.constant 0 : i32
    return %arg1, %c0_i32, %c0_i32_0 : i32, i32, i32
  }
  func.func @transform_16(%arg0: i32, %arg1: i32, %arg2: memref<2xi32, #tpu.memory_space<smem>>) -> (i32, i32, i32) {
    %c0_i32 = arith.constant 0 : i32
    %c0_i32_0 = arith.constant 0 : i32
    %c0_i32_1 = arith.constant 0 : i32
    return %arg1, %c0_i32, %c0_i32_0 : i32, i32, i32
  }
  func.func @transform_17(%arg0: i32, %arg1: i32, %arg2: memref<2xi32, #tpu.memory_space<smem>>) -> (i32, i32) {
    %c0_i32 = arith.constant 0 : i32
    %c0_i32_0 = arith.constant 0 : i32
    %c0_i32_1 = arith.constant 0 : i32
    return %c0_i32, %c0_i32_0 : i32, i32
  }
  func.func @transform_18(%arg0: i32, %arg1: i32, %arg2: memref<2xi32, #tpu.memory_space<smem>>) -> (i32, i32) {
    %c0_i32 = arith.constant 0 : i32
    %c0_i32_0 = arith.constant 0 : i32
    %c0_i32_1 = arith.constant 0 : i32
    return %c0_i32, %c0_i32_0 : i32, i32
  }
  func.func @transform_19(%arg0: i32, %arg1: i32, %arg2: memref<2xi32, #tpu.memory_space<smem>>) -> (i32, i32) {
    %c0_i32 = arith.constant 0 : i32
    %c0_i32_0 = arith.constant 0 : i32
    %c0_i32_1 = arith.constant 0 : i32
    return %c0_i32, %c0_i32_0 : i32, i32
  }
  func.func @transform_20(%arg0: i32, %arg1: i32, %arg2: memref<2xi32, #tpu.memory_space<smem>>) -> (i32, i32) {
    %c0_i32 = arith.constant 0 : i32
    %c0_i32_0 = arith.constant 0 : i32
    %c0_i32_1 = arith.constant 0 : i32
    return %c0_i32, %c0_i32_0 : i32, i32
  }
  func.func @transform_21(%arg0: i32, %arg1: i32, %arg2: memref<2xi32, #tpu.memory_space<smem>>) -> (i32, i32, i32) {
    %c0_i32 = arith.constant 0 : i32
    %c0_i32_0 = arith.constant 0 : i32
    %c0_i32_1 = arith.constant 0 : i32
    return %arg0, %c0_i32, %c0_i32_0 : i32, i32, i32
  }
}

</mosaic_0001>

<llo_original>
// kernel: roberta_classifier_forward.1
$region0: #{roberta_classifier_forward.1}
  #allocation0 [shape = 'u32[]', space=smem, size = 0x4, offset = 0x4, fixed_abs, tag = 'smem constant byte address 0x4 - core index']
  #allocation1 [shape = 'u32[144,128]{1,0:T(1,128)}', space=vmem, size = 0x12000, scoped, tag = 'internal scratch']
  #allocation2 [shape = 'f32[8,32]{1,0:T(8,128)}', space=vmem, size = 0x1000, scoped, tag = 'scratch operand']
  #allocation3 [shape = 'f32[8,32]{1,0:T(8,128)}', space=vmem, size = 0x1000, scoped, tag = 'scratch operand']
  #allocation4 [shape = 's32[1]{0}', space=sflag, size = 0x4, scoped, tag = 'scoped memory for roberta_classifier_forward.1']
  #allocation5 [shape = 'u8[512]{0}', space=smem, size = 0x200, scoped, tag = 'prefetched SMEM operand 0']
  %s0 = inlined_call_operand.vmem [shape: s32[2], index: 0, kind: input, shape index: {}]
  %s1 = inlined_call_operand.vmem [shape: f32[2,8,32], index: 1, kind: input, shape index: {}]
  %s2 = inlined_call_operand.vmem [shape: f32[8,32], index: 2, kind: input, shape index: {}]
  %s3 = inlined_call_operand.vmem [shape: f32[1,32], index: 3, kind: input, shape index: {}]
  %s4 = inlined_call_operand.vmem [shape: f32[1,32], index: 4, kind: input, shape index: {}]
  %s5 = inlined_call_operand.vmem [shape: f32[1,32], index: 5, kind: input, shape index: {}]
  %s6 = inlined_call_operand.vmem [shape: bf16[2,32,96], index: 6, kind: input, shape index: {}]
  %s7 = inlined_call_operand.vmem [shape: f32[2,1,96], index: 7, kind: input, shape index: {}]
  %s8 = inlined_call_operand.vmem [shape: bf16[2,32,32], index: 8, kind: input, shape index: {}]
  %s9 = inlined_call_operand.vmem [shape: f32[2,1,32], index: 9, kind: input, shape index: {}]
  %s10 = inlined_call_operand.vmem [shape: f32[2,1,32], index: 10, kind: input, shape index: {}]
  %s11 = inlined_call_operand.vmem [shape: f32[2,1,32], index: 11, kind: input, shape index: {}]
  %s12 = inlined_call_operand.vmem [shape: bf16[2,32,64], index: 12, kind: input, shape index: {}]
  %s13 = inlined_call_operand.vmem [shape: f32[2,1,64], index: 13, kind: input, shape index: {}]
  %s14 = inlined_call_operand.vmem [shape: bf16[2,64,32], index: 14, kind: input, shape index: {}]
  %s15 = inlined_call_operand.vmem [shape: f32[2,1,32], index: 15, kind: input, shape index: {}]
  %s16 = inlined_call_operand.vmem [shape: f32[2,1,32], index: 16, kind: input, shape index: {}]
  %s17 = inlined_call_operand.vmem [shape: f32[2,1,32], index: 17, kind: input, shape index: {}]
  %s18 = inlined_call_operand.vmem [shape: f32[32,32], index: 18, kind: input, shape index: {}]
  %s19 = inlined_call_operand.vmem [shape: f32[1,32], index: 19, kind: input, shape index: {}]
  %s20 = inlined_call_operand.vmem [shape: f32[32,128], index: 20, kind: input, shape index: {}]
  %s21 = inlined_call_operand.vmem [shape: f32[1,128], index: 21, kind: input, shape index: {}]
  %s22 = inlined_call_operand.hbm [shape: f32[2,1,128], index: 22, kind: output, shape index: {}]
  %s23 = sld [smem:[#allocation0]]
  $region125: #{roberta_classifier_forward.1} parent=0
    _
  %s25 = ssub.s32 1, %s23
  %s26 = scalar_select 0, %s25, %s23
  %s27 = sshll.u32 %s0, 4
  %s28 = int_to_ptr.vmem [resolvable:$true] %s27
  %30 = dma.vmem_to_smem %s28, 16, [#allocation5], [#allocation4]
  %31 = dma.done [#allocation4], 16
  %32 = sfence
  $region1: #{roberta_classifier_forward.1} parent=0
    #allocation6 [shape = 'u8[1024]{0}', space=vmem, size = 0x400, scoped, tag = 'output window, operand 0']
    #allocation7 [shape = 's32[2]{0}', space=sflag, size = 0x8, scoped, tag = 'scoped memory for roberta_classifier_forward.1']
    %33 = vsyncpa [#allocation7], 0
    %s34 = scalar_lea.sflag [#allocation7], 1
    %35 = vsyncpa %s34, 0
    loop: start=0, step=1, limit=6
    $region2: #{roberta_classifier_forward.1} parent=1 // loop_pre_header
      _
    $region3: #{roberta_classifier_forward.1} parent=1 // loop_header
      %s37 = sphi 0, %s41
      %p38 = scmp.ge.s32.totalorder %s37, 6
      %s44 = sphi 0, %s56
      %s45 = sphi 0, %s52
      %s46 = sphi 0, %s44
      %s47 = sphi 0, %s45
      %s48 = sphi 0, %s46
      %s49 = sphi 0, %s47
      %s59 = sphi 0, %s61
      %s62 = sphi 0, %s59
      %s63 = sphi 0, %s62
      %s79 = sphi 0, %s63
      %s83 = sphi 0, %s83
      %s85 = sphi 0, %s83
      %s86 = sphi 0, %s85
      %s100 = sphi 0, %s86
      %s104 = sphi 0, %s104
      %s106 = sphi 0, %s104
      %s107 = sphi 0, %s106
      %s121 = sphi 0, %s107
      %s125 = sphi 0, %s125
      %s127 = sphi 0, %s125
      %s128 = sphi 0, %s127
      %s142 = sphi 0, %s128
      %s146 = sphi 0, %s146
      %s148 = sphi 0, %s146
      %s149 = sphi 0, %s148
      %s163 = sphi 0, %s149
      %s169 = sphi 0, %s171
      %s172 = sphi 0, %s169
      %s173 = sphi 0, %s172
      %s189 = sphi 0, %s173
      %s195 = sphi 0, %s197
      %s198 = sphi 0, %s195
      %s199 = sphi 0, %s198
      %s215 = sphi 0, %s199
      %s221 = sphi 0, %s223
      %s224 = sphi 0, %s221
      %s225 = sphi 0, %s224
      %s241 = sphi 0, %s225
      %s247 = sphi 0, %s249
      %s250 = sphi 0, %s247
      %s251 = sphi 0, %s250
      %s267 = sphi 0, %s251
      %s273 = sphi 0, %s275
      %s276 = sphi 0, %s273
      %s277 = sphi 0, %s276
      %s293 = sphi 0, %s277
      %s299 = sphi 0, %s301
      %s302 = sphi 0, %s299
      %s303 = sphi 0, %s302
      %s319 = sphi 0, %s303
      %s325 = sphi 0, %s327
      %s328 = sphi 0, %s325
      %s329 = sphi 0, %s328
      %s345 = sphi 0, %s329
      %s351 = sphi 0, %s353
      %s354 = sphi 0, %s351
      %s355 = sphi 0, %s354
      %s371 = sphi 0, %s355
      %s377 = sphi 0, %s379
      %s380 = sphi 0, %s377
      %s381 = sphi 0, %s380
      %s397 = sphi 0, %s381
      %s403 = sphi 0, %s405
      %s406 = sphi 0, %s403
      %s407 = sphi 0, %s406
      %s423 = sphi 0, %s407
      %s429 = sphi 0, %s431
      %s432 = sphi 0, %s429
      %s433 = sphi 0, %s432
      %s449 = sphi 0, %s433
      %s455 = sphi 0, %s457
      %s458 = sphi 0, %s455
      %s459 = sphi 0, %s458
      %s475 = sphi 0, %s459
      %s479 = sphi 0, %s479
      %s481 = sphi 0, %s479
      %s482 = sphi 0, %s481
      %s496 = sphi 0, %s482
      %s500 = sphi 0, %s500
      %s502 = sphi 0, %s500
      %s503 = sphi 0, %s502
      %s517 = sphi 0, %s503
      %s521 = sphi 0, %s521
      %s523 = sphi 0, %s521
      %s524 = sphi 0, %s523
      %s538 = sphi 0, %s524
      %s542 = sphi 0, %s542
      %s544 = sphi 0, %s542
      %s545 = sphi 0, %s544
      %s559 = sphi 0, %s545
      %s565 = sphi 0, %s567
      %s568 = sphi 0, %s565
      %s569 = sphi 0, %s568
      %s585 = sphi 0, %s569
    $region4: #{roberta_classifier_forward.1} parent=1 // loop_header_branch
      %40 = sbr.rel (%p38) target = $region8
    $region5: #{roberta_classifier_forward.1} parent=1 // loop_body
      %s42 = ssub.s32 %s37, 1
      %s43 = ssub.s32 %s37, 2
      %s50 = sadd.s32 1, %s45
      %p51 = scmp.ge.s32.totalorder %s50, 2
      %s52 = scalar_select %p51, 0, %s50
      %s53 = sadd.s32 1, %s44
      %s54 = scalar_select %p51, %s53, %s44
      %p55 = scmp.ge.s32.totalorder %s54, 2
      %s56 = scalar_select %p55, 0, %s54
      %s57 = ssub.s32 %s44, %s56
      %p58 = scmp.eq.s32.totalorder %s57, 0
      %s60 = sadd.s32 %s59, 1
      %s61 = scalar_select %p58, %s59, %s60
      %p64 = pneg %p58
      %p65 = scmp.eq.s32.totalorder %s37, 3
      %p66 = por %p64, %p65
      %p67 = scmp.ne.s32.totalorder %s59, %s62
      %p68 = scmp.eq.s32.totalorder %s37, 0
      %p69 = por %p67, %p68
      %p70 = scmp.ne.s32.totalorder %s59, %s62
      %p71 = scmp.eq.s32.totalorder %s42, 3
      %p72 = por %p70, %p71
      %p73 = scmp.ne.s32.totalorder %s62, %s63
      %p74 = scmp.eq.s32.totalorder %s42, 0
      %p75 = por %p73, %p74
      %p76 = scmp.ne.s32.totalorder %s62, %s63
      %p77 = scmp.eq.s32.totalorder %s43, 3
      %p78 = por %p76, %p77
      %p80 = scmp.ne.s32.totalorder %s63, %s79
      %p81 = scmp.eq.s32.totalorder %s43, 0
      %p82 = por %p80, %p81
      %s84 = sadd.s32 %s83, 1
      %p87 = scmp.eq.s32.totalorder %s37, 3
      %p88 = scmp.ne.s32.totalorder %s83, %s85
      %p89 = scmp.eq.s32.totalorder %s37, 0
      %p90 = por %p88, %p89
      %p91 = scmp.ne.s32.totalorder %s83, %s85
      %p92 = scmp.eq.s32.totalorder %s42, 3
      %p93 = por %p91, %p92
      %p94 = scmp.ne.s32.totalorder %s85, %s86
      %p95 = scmp.eq.s32.totalorder %s42, 0
      %p96 = por %p94, %p95
      %p97 = scmp.ne.s32.totalorder %s85, %s86
      %p98 = scmp.eq.s32.totalorder %s43, 3
      %p99 = por %p97, %p98
      %p101 = scmp.ne.s32.totalorder %s86, %s100
      %p102 = scmp.eq.s32.totalorder %s43, 0
      %p103 = por %p101, %p102
      %s105 = sadd.s32 %s104, 1
      %p108 = scmp.eq.s32.totalorder %s37, 3
      %p109 = scmp.ne.s32.totalorder %s104, %s106
      %p110 = scmp.eq.s32.totalorder %s37, 0
      %p111 = por %p109, %p110
      %p112 = scmp.ne.s32.totalorder %s104, %s106
      %p113 = scmp.eq.s32.totalorder %s42, 3
      %p114 = por %p112, %p113
      %p115 = scmp.ne.s32.totalorder %s106, %s107
      %p116 = scmp.eq.s32.totalorder %s42, 0
      %p117 = por %p115, %p116
      %p118 = scmp.ne.s32.totalorder %s106, %s107
      %p119 = scmp.eq.s32.totalorder %s43, 3
      %p120 = por %p118, %p119
      %p122 = scmp.ne.s32.totalorder %s107, %s121
      %p123 = scmp.eq.s32.totalorder %s43, 0
      %p124 = por %p122, %p123
      %s126 = sadd.s32 %s125, 1
      %p129 = scmp.eq.s32.totalorder %s37, 3
      %p130 = scmp.ne.s32.totalorder %s125, %s127
      %p131 = scmp.eq.s32.totalorder %s37, 0
      %p132 = por %p130, %p131
      %p133 = scmp.ne.s32.totalorder %s125, %s127
      %p134 = scmp.eq.s32.totalorder %s42, 3
      %p135 = por %p133, %p134
      %p136 = scmp.ne.s32.totalorder %s127, %s128
      %p137 = scmp.eq.s32.totalorder %s42, 0
      %p138 = por %p136, %p137
      %p139 = scmp.ne.s32.totalorder %s127, %s128
      %p140 = scmp.eq.s32.totalorder %s43, 3
      %p141 = por %p139, %p140
      %p143 = scmp.ne.s32.totalorder %s128, %s142
      %p144 = scmp.eq.s32.totalorder %s43, 0
      %p145 = por %p143, %p144
      %s147 = sadd.s32 %s146, 1
      %p150 = scmp.eq.s32.totalorder %s37, 3
      %p151 = scmp.ne.s32.totalorder %s146, %s148
      %p152 = scmp.eq.s32.totalorder %s37, 0
      %p153 = por %p151, %p152
      %p154 = scmp.ne.s32.totalorder %s146, %s148
      %p155 = scmp.eq.s32.totalorder %s42, 3
      %p156 = por %p154, %p155
      %p157 = scmp.ne.s32.totalorder %s148, %s149
      %p158 = scmp.eq.s32.totalorder %s42, 0
      %p159 = por %p157, %p158
      %p160 = scmp.ne.s32.totalorder %s148, %s149
      %p161 = scmp.eq.s32.totalorder %s43, 3
      %p162 = por %p160, %p161
      %p164 = scmp.ne.s32.totalorder %s149, %s163
      %p165 = scmp.eq.s32.totalorder %s43, 0
      %p166 = por %p164, %p165
      %s167 = ssub.s32 %s45, %s52
      %p168 = scmp.eq.s32.totalorder %s167, 0
      %s170 = sadd.s32 %s169, 1
      %s171 = scalar_select %p168, %s169, %s170
      %p174 = pneg %p168
      %p175 = scmp.eq.s32.totalorder %s37, 3
      %p176 = por %p174, %p175
      %p177 = scmp.ne.s32.totalorder %s169, %s172
      %p178 = scmp.eq.s32.totalorder %s37, 0
      %p179 = por %p177, %p178
      %p180 = scmp.ne.s32.totalorder %s169, %s172
      %p181 = scmp.eq.s32.totalorder %s42, 3
      %p182 = por %p180, %p181
      %p183 = scmp.ne.s32.totalorder %s172, %s173
      %p184 = scmp.eq.s32.totalorder %s42, 0
      %p185 = por %p183, %p184
      %p186 = scmp.ne.s32.totalorder %s172, %s173
      %p187 = scmp.eq.s32.totalorder %s43, 3
      %p188 = por %p186, %p187
      %p190 = scmp.ne.s32.totalorder %s173, %s189
      %p191 = scmp.eq.s32.totalorder %s43, 0
      %p192 = por %p190, %p191
      %s193 = ssub.s32 %s45, %s52
      %p194 = scmp.eq.s32.totalorder %s193, 0
      %s196 = sadd.s32 %s195, 1
      %s197 = scalar_select %p194, %s195, %s196
      %p200 = pneg %p194
      %p201 = scmp.eq.s32.totalorder %s37, 3
      %p202 = por %p200, %p201
      %p203 = scmp.ne.s32.totalorder %s195, %s198
      %p204 = scmp.eq.s32.totalorder %s37, 0
      %p205 = por %p203, %p204
      %p206 = scmp.ne.s32.totalorder %s195, %s198
      %p207 = scmp.eq.s32.totalorder %s42, 3
      %p208 = por %p206, %p207
      %p209 = scmp.ne.s32.totalorder %s198, %s199
      %p210 = scmp.eq.s32.totalorder %s42, 0
      %p211 = por %p209, %p210
      %p212 = scmp.ne.s32.totalorder %s198, %s199
      %p213 = scmp.eq.s32.totalorder %s43, 3
      %p214 = por %p212, %p213
      %p216 = scmp.ne.s32.totalorder %s199, %s215
      %p217 = scmp.eq.s32.totalorder %s43, 0
      %p218 = por %p216, %p217
      %s219 = ssub.s32 %s45, %s52
      %p220 = scmp.eq.s32.totalorder %s219, 0
      %s222 = sadd.s32 %s221, 1
      %s223 = scalar_select %p220, %s221, %s222
      %p226 = pneg %p220
      %p227 = scmp.eq.s32.totalorder %s37, 3
      %p228 = por %p226, %p227
      %p229 = scmp.ne.s32.totalorder %s221, %s224
      %p230 = scmp.eq.s32.totalorder %s37, 0
      %p231 = por %p229, %p230
      %p232 = scmp.ne.s32.totalorder %s221, %s224
      %p233 = scmp.eq.s32.totalorder %s42, 3
      %p234 = por %p232, %p233
      %p235 = scmp.ne.s32.totalorder %s224, %s225
      %p236 = scmp.eq.s32.totalorder %s42, 0
      %p237 = por %p235, %p236
      %p238 = scmp.ne.s32.totalorder %s224, %s225
      %p239 = scmp.eq.s32.totalorder %s43, 3
      %p240 = por %p238, %p239
      %p242 = scmp.ne.s32.totalorder %s225, %s241
      %p243 = scmp.eq.s32.totalorder %s43, 0
      %p244 = por %p242, %p243
      %s245 = ssub.s32 %s45, %s52
      %p246 = scmp.eq.s32.totalorder %s245, 0
      %s248 = sadd.s32 %s247, 1
      %s249 = scalar_select %p246, %s247, %s248
      %p252 = pneg %p246
      %p253 = scmp.eq.s32.totalorder %s37, 3
      %p254 = por %p252, %p253
      %p255 = scmp.ne.s32.totalorder %s247, %s250
      %p256 = scmp.eq.s32.totalorder %s37, 0
      %p257 = por %p255, %p256
      %p258 = scmp.ne.s32.totalorder %s247, %s250
      %p259 = scmp.eq.s32.totalorder %s42, 3
      %p260 = por %p258, %p259
      %p261 = scmp.ne.s32.totalorder %s250, %s251
      %p262 = scmp.eq.s32.totalorder %s42, 0
      %p263 = por %p261, %p262
      %p264 = scmp.ne.s32.totalorder %s250, %s251
      %p265 = scmp.eq.s32.totalorder %s43, 3
      %p266 = por %p264, %p265
      %p268 = scmp.ne.s32.totalorder %s251, %s267
      %p269 = scmp.eq.s32.totalorder %s43, 0
      %p270 = por %p268, %p269
      %s271 = ssub.s32 %s45, %s52
      %p272 = scmp.eq.s32.totalorder %s271, 0
      %s274 = sadd.s32 %s273, 1
      %s275 = scalar_select %p272, %s273, %s274
      %p278 = pneg %p272
      %p279 = scmp.eq.s32.totalorder %s37, 3
      %p280 = por %p278, %p279
      %p281 = scmp.ne.s32.totalorder %s273, %s276
      %p282 = scmp.eq.s32.totalorder %s37, 0
      %p283 = por %p281, %p282
      %p284 = scmp.ne.s32.totalorder %s273, %s276
      %p285 = scmp.eq.s32.totalorder %s42, 3
      %p286 = por %p284, %p285
      %p287 = scmp.ne.s32.totalorder %s276, %s277
      %p288 = scmp.eq.s32.totalorder %s42, 0
      %p289 = por %p287, %p288
      %p290 = scmp.ne.s32.totalorder %s276, %s277
      %p291 = scmp.eq.s32.totalorder %s43, 3
      %p292 = por %p290, %p291
      %p294 = scmp.ne.s32.totalorder %s277, %s293
      %p295 = scmp.eq.s32.totalorder %s43, 0
      %p296 = por %p294, %p295
      %s297 = ssub.s32 %s45, %s52
      %p298 = scmp.eq.s32.totalorder %s297, 0
      %s300 = sadd.s32 %s299, 1
      %s301 = scalar_select %p298, %s299, %s300
      %p304 = pneg %p298
      %p305 = scmp.eq.s32.totalorder %s37, 3
      %p306 = por %p304, %p305
      %p307 = scmp.ne.s32.totalorder %s299, %s302
      %p308 = scmp.eq.s32.totalorder %s37, 0
      %p309 = por %p307, %p308
      %p310 = scmp.ne.s32.totalorder %s299, %s302
      %p311 = scmp.eq.s32.totalorder %s42, 3
      %p312 = por %p310, %p311
      %p313 = scmp.ne.s32.totalorder %s302, %s303
      %p314 = scmp.eq.s32.totalorder %s42, 0
      %p315 = por %p313, %p314
      %p316 = scmp.ne.s32.totalorder %s302, %s303
      %p317 = scmp.eq.s32.totalorder %s43, 3
      %p318 = por %p316, %p317
      %p320 = scmp.ne.s32.totalorder %s303, %s319
      %p321 = scmp.eq.s32.totalorder %s43, 0
      %p322 = por %p320, %p321
      %s323 = ssub.s32 %s45, %s52
      %p324 = scmp.eq.s32.totalorder %s323, 0
      %s326 = sadd.s32 %s325, 1
      %s327 = scalar_select %p324, %s325, %s326
      %p330 = pneg %p324
      %p331 = scmp.eq.s32.totalorder %s37, 3
      %p332 = por %p330, %p331
      %p333 = scmp.ne.s32.totalorder %s325, %s328
      %p334 = scmp.eq.s32.totalorder %s37, 0
      %p335 = por %p333, %p334
      %p336 = scmp.ne.s32.totalorder %s325, %s328
      %p337 = scmp.eq.s32.totalorder %s42, 3
      %p338 = por %p336, %p337
      %p339 = scmp.ne.s32.totalorder %s328, %s329
      %p340 = scmp.eq.s32.totalorder %s42, 0
      %p341 = por %p339, %p340
      %p342 = scmp.ne.s32.totalorder %s328, %s329
      %p343 = scmp.eq.s32.totalorder %s43, 3
      %p344 = por %p342, %p343
      %p346 = scmp.ne.s32.totalorder %s329, %s345
      %p347 = scmp.eq.s32.totalorder %s43, 0
      %p348 = por %p346, %p347
      %s349 = ssub.s32 %s45, %s52
      %p350 = scmp.eq.s32.totalorder %s349, 0
      %s352 = sadd.s32 %s351, 1
      %s353 = scalar_select %p350, %s351, %s352
      %p356 = pneg %p350
      %p357 = scmp.eq.s32.totalorder %s37, 3
      %p358 = por %p356, %p357
      %p359 = scmp.ne.s32.totalorder %s351, %s354
      %p360 = scmp.eq.s32.totalorder %s37, 0
      %p361 = por %p359, %p360
      %p362 = scmp.ne.s32.totalorder %s351, %s354
      %p363 = scmp.eq.s32.totalorder %s42, 3
      %p364 = por %p362, %p363
      %p365 = scmp.ne.s32.totalorder %s354, %s355
      %p366 = scmp.eq.s32.totalorder %s42, 0
      %p367 = por %p365, %p366
      %p368 = scmp.ne.s32.totalorder %s354, %s355
      %p369 = scmp.eq.s32.totalorder %s43, 3
      %p370 = por %p368, %p369
      %p372 = scmp.ne.s32.totalorder %s355, %s371
      %p373 = scmp.eq.s32.totalorder %s43, 0
      %p374 = por %p372, %p373
      %s375 = ssub.s32 %s45, %s52
      %p376 = scmp.eq.s32.totalorder %s375, 0
      %s378 = sadd.s32 %s377, 1
      %s379 = scalar_select %p376, %s377, %s378
      %p382 = pneg %p376
      %p383 = scmp.eq.s32.totalorder %s37, 3
      %p384 = por %p382, %p383
      %p385 = scmp.ne.s32.totalorder %s377, %s380
      %p386 = scmp.eq.s32.totalorder %s37, 0
      %p387 = por %p385, %p386
      %p388 = scmp.ne.s32.totalorder %s377, %s380
      %p389 = scmp.eq.s32.totalorder %s42, 3
      %p390 = por %p388, %p389
      %p391 = scmp.ne.s32.totalorder %s380, %s381
      %p392 = scmp.eq.s32.totalorder %s42, 0
      %p393 = por %p391, %p392
      %p394 = scmp.ne.s32.totalorder %s380, %s381
      %p395 = scmp.eq.s32.totalorder %s43, 3
      %p396 = por %p394, %p395
      %p398 = scmp.ne.s32.totalorder %s381, %s397
      %p399 = scmp.eq.s32.totalorder %s43, 0
      %p400 = por %p398, %p399
      %s401 = ssub.s32 %s45, %s52
      %p402 = scmp.eq.s32.totalorder %s401, 0
      %s404 = sadd.s32 %s403, 1
      %s405 = scalar_select %p402, %s403, %s404
      %p408 = pneg %p402
      %p409 = scmp.eq.s32.totalorder %s37, 3
      %p410 = por %p408, %p409
      %p411 = scmp.ne.s32.totalorder %s403, %s406
      %p412 = scmp.eq.s32.totalorder %s37, 0
      %p413 = por %p411, %p412
      %p414 = scmp.ne.s32.totalorder %s403, %s406
      %p415 = scmp.eq.s32.totalorder %s42, 3
      %p416 = por %p414, %p415
      %p417 = scmp.ne.s32.totalorder %s406, %s407
      %p418 = scmp.eq.s32.totalorder %s42, 0
      %p419 = por %p417, %p418
      %p420 = scmp.ne.s32.totalorder %s406, %s407
      %p421 = scmp.eq.s32.totalorder %s43, 3
      %p422 = por %p420, %p421
      %p424 = scmp.ne.s32.totalorder %s407, %s423
      %p425 = scmp.eq.s32.totalorder %s43, 0
      %p426 = por %p424, %p425
      %s427 = ssub.s32 %s45, %s52
      %p428 = scmp.eq.s32.totalorder %s427, 0
      %s430 = sadd.s32 %s429, 1
      %s431 = scalar_select %p428, %s429, %s430
      %p434 = pneg %p428
      %p435 = scmp.eq.s32.totalorder %s37, 3
      %p436 = por %p434, %p435
      %p437 = scmp.ne.s32.totalorder %s429, %s432
      %p438 = scmp.eq.s32.totalorder %s37, 0
      %p439 = por %p437, %p438
      %p440 = scmp.ne.s32.totalorder %s429, %s432
      %p441 = scmp.eq.s32.totalorder %s42, 3
      %p442 = por %p440, %p441
      %p443 = scmp.ne.s32.totalorder %s432, %s433
      %p444 = scmp.eq.s32.totalorder %s42, 0
      %p445 = por %p443, %p444
      %p446 = scmp.ne.s32.totalorder %s432, %s433
      %p447 = scmp.eq.s32.totalorder %s43, 3
      %p448 = por %p446, %p447
      %p450 = scmp.ne.s32.totalorder %s433, %s449
      %p451 = scmp.eq.s32.totalorder %s43, 0
      %p452 = por %p450, %p451
      %s453 = ssub.s32 %s45, %s52
      %p454 = scmp.eq.s32.totalorder %s453, 0
      %s456 = sadd.s32 %s455, 1
      %s457 = scalar_select %p454, %s455, %s456
      %p460 = pneg %p454
      %p461 = scmp.eq.s32.totalorder %s37, 3
      %p462 = por %p460, %p461
      %p463 = scmp.ne.s32.totalorder %s455, %s458
      %p464 = scmp.eq.s32.totalorder %s37, 0
      %p465 = por %p463, %p464
      %p466 = scmp.ne.s32.totalorder %s455, %s458
      %p467 = scmp.eq.s32.totalorder %s42, 3
      %p468 = por %p466, %p467
      %p469 = scmp.ne.s32.totalorder %s458, %s459
      %p470 = scmp.eq.s32.totalorder %s42, 0
      %p471 = por %p469, %p470
      %p472 = scmp.ne.s32.totalorder %s458, %s459
      %p473 = scmp.eq.s32.totalorder %s43, 3
      %p474 = por %p472, %p473
      %p476 = scmp.ne.s32.totalorder %s459, %s475
      %p477 = scmp.eq.s32.totalorder %s43, 0
      %p478 = por %p476, %p477
      %s480 = sadd.s32 %s479, 1
      %p483 = scmp.eq.s32.totalorder %s37, 3
      %p484 = scmp.ne.s32.totalorder %s479, %s481
      %p485 = scmp.eq.s32.totalorder %s37, 0
      %p486 = por %p484, %p485
      %p487 = scmp.ne.s32.totalorder %s479, %s481
      %p488 = scmp.eq.s32.totalorder %s42, 3
      %p489 = por %p487, %p488
      %p490 = scmp.ne.s32.totalorder %s481, %s482
      %p491 = scmp.eq.s32.totalorder %s42, 0
      %p492 = por %p490, %p491
      %p493 = scmp.ne.s32.totalorder %s481, %s482
      %p494 = scmp.eq.s32.totalorder %s43, 3
      %p495 = por %p493, %p494
      %p497 = scmp.ne.s32.totalorder %s482, %s496
      %p498 = scmp.eq.s32.totalorder %s43, 0
      %p499 = por %p497, %p498
      %s501 = sadd.s32 %s500, 1
      %p504 = scmp.eq.s32.totalorder %s37, 3
      %p505 = scmp.ne.s32.totalorder %s500, %s502
      %p506 = scmp.eq.s32.totalorder %s37, 0
      %p507 = por %p505, %p506
      %p508 = scmp.ne.s32.totalorder %s500, %s502
      %p509 = scmp.eq.s32.totalorder %s42, 3
      %p510 = por %p508, %p509
      %p511 = scmp.ne.s32.totalorder %s502, %s503
      %p512 = scmp.eq.s32.totalorder %s42, 0
      %p513 = por %p511, %p512
      %p514 = scmp.ne.s32.totalorder %s502, %s503
      %p515 = scmp.eq.s32.totalorder %s43, 3
      %p516 = por %p514, %p515
      %p518 = scmp.ne.s32.totalorder %s503, %s517
      %p519 = scmp.eq.s32.totalorder %s43, 0
      %p520 = por %p518, %p519
      %s522 = sadd.s32 %s521, 1
      %p525 = scmp.eq.s32.totalorder %s37, 3
      %p526 = scmp.ne.s32.totalorder %s521, %s523
      %p527 = scmp.eq.s32.totalorder %s37, 0
      %p528 = por %p526, %p527
      %p529 = scmp.ne.s32.totalorder %s521, %s523
      %p530 = scmp.eq.s32.totalorder %s42, 3
      %p531 = por %p529, %p530
      %p532 = scmp.ne.s32.totalorder %s523, %s524
      %p533 = scmp.eq.s32.totalorder %s42, 0
      %p534 = por %p532, %p533
      %p535 = scmp.ne.s32.totalorder %s523, %s524
      %p536 = scmp.eq.s32.totalorder %s43, 3
      %p537 = por %p535, %p536
      %p539 = scmp.ne.s32.totalorder %s524, %s538
      %p540 = scmp.eq.s32.totalorder %s43, 0
      %p541 = por %p539, %p540
      %s543 = sadd.s32 %s542, 1
      %p546 = scmp.eq.s32.totalorder %s37, 3
      %p547 = scmp.ne.s32.totalorder %s542, %s544
      %p548 = scmp.eq.s32.totalorder %s37, 0
      %p549 = por %p547, %p548
      %p550 = scmp.ne.s32.totalorder %s542, %s544
      %p551 = scmp.eq.s32.totalorder %s42, 3
      %p552 = por %p550, %p551
      %p553 = scmp.ne.s32.totalorder %s544, %s545
      %p554 = scmp.eq.s32.totalorder %s42, 0
      %p555 = por %p553, %p554
      %p556 = scmp.ne.s32.totalorder %s544, %s545
      %p557 = scmp.eq.s32.totalorder %s43, 3
      %p558 = por %p556, %p557
      %p560 = scmp.ne.s32.totalorder %s545, %s559
      %p561 = scmp.eq.s32.totalorder %s43, 0
      %p562 = por %p560, %p561
      %s563 = ssub.s32 %s44, %s56
      %p564 = scmp.eq.s32.totalorder %s563, 0
      %s566 = sadd.s32 %s565, 1
      %s567 = scalar_select %p564, %s565, %s566
      %p570 = pneg %p564
      %p571 = scmp.eq.s32.totalorder %s37, 3
      %p572 = por %p570, %p571
      %p573 = scmp.ne.s32.totalorder %s565, %s568
      %p574 = scmp.eq.s32.totalorder %s37, 0
      %p575 = por %p573, %p574
      %p576 = scmp.ne.s32.totalorder %s565, %s568
      %p577 = scmp.eq.s32.totalorder %s42, 3
      %p578 = por %p576, %p577
      %p579 = scmp.ne.s32.totalorder %s568, %s569
      %p580 = scmp.eq.s32.totalorder %s42, 0
      %p581 = por %p579, %p580
      %p582 = scmp.ne.s32.totalorder %s568, %s569
      %p583 = scmp.eq.s32.totalorder %s43, 3
      %p584 = por %p582, %p583
      %p586 = scmp.ne.s32.totalorder %s569, %s585
      %p587 = scmp.eq.s32.totalorder %s43, 0
      %p588 = por %p586, %p587
      %p589 = scmp.le.s32.totalorder 1, %s37
      %p590 = scmp.lt.s32.totalorder %s37, 5
      %p591 = pnand %p589, %p590
      %p592 = pneg %p591
      // Predicated region
      $region9: #{roberta_classifier_forward.1} parent=5 // pred_check
        _
      $region10: #{roberta_classifier_forward.1} parent=5 // pred_check_branch
        %594 = sbr.rel (%p591) target = $region12
      $region11: #{roberta_classifier_forward.1} parent=5 // pred_region
        %s595 = ssub.s32 %s37, 1
        // Predicated region
        $region13: #{roberta_classifier_forward.1} parent=11 // pred_check
          %p596 = pneg %p96
        $region14: #{roberta_classifier_forward.1} parent=11 // pred_check_branch
          %598 = sbr.rel (%p596) target = $region16
        $region15: #{roberta_classifier_forward.1} parent=11 // pred_region
          _
        $region16: #{roberta_classifier_forward.1} parent=11 // pred_fallthru
          _
        // Predicated region
        $region17: #{roberta_classifier_forward.1} parent=11 // pred_check
          %p599 = pneg %p117
        $region18: #{roberta_classifier_forward.1} parent=11 // pred_check_branch
          %601 = sbr.rel (%p599) target = $region20
        $region19: #{roberta_classifier_forward.1} parent=11 // pred_region
          _
        $region20: #{roberta_classifier_forward.1} parent=11 // pred_fallthru
          _
        // Predicated region
        $region21: #{roberta_classifier_forward.1} parent=11 // pred_check
          %p602 = pneg %p138
        $region22: #{roberta_classifier_forward.1} parent=11 // pred_check_branch
          %604 = sbr.rel (%p602) target = $region24
        $region23: #{roberta_classifier_forward.1} parent=11 // pred_region
          _
        $region24: #{roberta_classifier_forward.1} parent=11 // pred_fallthru
          _
        // Predicated region
        $region25: #{roberta_classifier_forward.1} parent=11 // pred_check
          %p605 = pneg %p159
        $region26: #{roberta_classifier_forward.1} parent=11 // pred_check_branch
          %607 = sbr.rel (%p605) target = $region28
        $region27: #{roberta_classifier_forward.1} parent=11 // pred_region
          _
        $region28: #{roberta_classifier_forward.1} parent=11 // pred_fallthru
          _
        // Predicated region
        $region29: #{roberta_classifier_forward.1} parent=11 // pred_check
          %p608 = pneg %p492
        $region30: #{roberta_classifier_forward.1} parent=11 // pred_check_branch
          %610 = sbr.rel (%p608) target = $region32
        $region31: #{roberta_classifier_forward.1} parent=11 // pred_region
          _
        $region32: #{roberta_classifier_forward.1} parent=11 // pred_fallthru
          _
        // Predicated region
        $region33: #{roberta_classifier_forward.1} parent=11 // pred_check
          %p611 = pneg %p513
        $region34: #{roberta_classifier_forward.1} parent=11 // pred_check_branch
          %613 = sbr.rel (%p611) target = $region36
        $region35: #{roberta_classifier_forward.1} parent=11 // pred_region
          _
        $region36: #{roberta_classifier_forward.1} parent=11 // pred_fallthru
          _
        // Predicated region
        $region37: #{roberta_classifier_forward.1} parent=11 // pred_check
          %p614 = pneg %p534
        $region38: #{roberta_classifier_forward.1} parent=11 // pred_check_branch
          %616 = sbr.rel (%p614) target = $region40
        $region39: #{roberta_classifier_forward.1} parent=11 // pred_region
          _
        $region40: #{roberta_classifier_forward.1} parent=11 // pred_fallthru
          _
        // Predicated region
        $region41: #{roberta_classifier_forward.1} parent=11 // pred_check
          %p617 = pneg %p555
        $region42: #{roberta_classifier_forward.1} parent=11 // pred_check_branch
          %619 = sbr.rel (%p617) target = $region44
        $region43: #{roberta_classifier_forward.1} parent=11 // pred_region
          _
        $region44: #{roberta_classifier_forward.1} parent=11 // pred_fallthru
          _
      $region12: #{roberta_classifier_forward.1} parent=5 // pred_fallthru
        _
      %p620 = scmp.lt.s32.totalorder %s37, 4
      // Predicated region
      $region45: #{roberta_classifier_forward.1} parent=5 // pred_check
        %p621 = pneg %p620
      $region46: #{roberta_classifier_forward.1} parent=5 // pred_check_branch
        %623 = sbr.rel (%p621) target = $region48
      $region47: #{roberta_classifier_forward.1} parent=5 // pred_region
        // Predicated region
        $region49: #{roberta_classifier_forward.1} parent=47 // pred_check
          %p624 = pneg %p69
        $region50: #{roberta_classifier_forward.1} parent=47 // pred_check_branch
          %626 = sbr.rel (%p624) target = $region52
        $region51: #{roberta_classifier_forward.1} parent=47 // pred_region
          %p627 = scmp.lt.s32.totalorder %s44, 1
          %s628 = scalar_select %p627, %s44, 1
          %s629 = smul.addr %s628, 8
          %s630 = scalar_lea.vmem %s1, %s629
        $region52: #{roberta_classifier_forward.1} parent=47 // pred_fallthru
          _
        // Predicated region
        $region53: #{roberta_classifier_forward.1} parent=47 // pred_check
          %p631 = pneg %p179
        $region54: #{roberta_classifier_forward.1} parent=47 // pred_check_branch
          %633 = sbr.rel (%p631) target = $region56
        $region55: #{roberta_classifier_forward.1} parent=47 // pred_region
          %p634 = scmp.lt.s32.totalorder %s45, 1
          %s635 = scalar_select %p634, %s45, 1
          %s636 = smul.addr %s635, 4
          %s637 = smul.addr %s636, 4
          %s638 = scalar_lea.vmem %s6, %s637
        $region56: #{roberta_classifier_forward.1} parent=47 // pred_fallthru
          _
        // Predicated region
        $region57: #{roberta_classifier_forward.1} parent=47 // pred_check
          %p639 = pneg %p205
        $region58: #{roberta_classifier_forward.1} parent=47 // pred_check_branch
          %641 = sbr.rel (%p639) target = $region60
        $region59: #{roberta_classifier_forward.1} parent=47 // pred_region
          %p642 = scmp.lt.s32.totalorder %s45, 1
          %s643 = scalar_select %p642, %s45, 1
          %s644 = scalar_lea.vmem %s7, %s643
        $region60: #{roberta_classifier_forward.1} parent=47 // pred_fallthru
          _
        // Predicated region
        $region61: #{roberta_classifier_forward.1} parent=47 // pred_check
          %p645 = pneg %p231
        $region62: #{roberta_classifier_forward.1} parent=47 // pred_check_branch
          %647 = sbr.rel (%p645) target = $region64
        $region63: #{roberta_classifier_forward.1} parent=47 // pred_region
          %p648 = scmp.lt.s32.totalorder %s45, 1
          %s649 = scalar_select %p648, %s45, 1
          %s650 = smul.addr %s649, 4
          %s651 = smul.addr %s650, 4
          %s652 = scalar_lea.vmem %s8, %s651
        $region64: #{roberta_classifier_forward.1} parent=47 // pred_fallthru
          _
        // Predicated region
        $region65: #{roberta_classifier_forward.1} parent=47 // pred_check
          %p653 = pneg %p257
        $region66: #{roberta_classifier_forward.1} parent=47 // pred_check_branch
          %655 = sbr.rel (%p653) target = $region68
        $region67: #{roberta_classifier_forward.1} parent=47 // pred_region
          %p656 = scmp.lt.s32.totalorder %s45, 1
          %s657 = scalar_select %p656, %s45, 1
          %s658 = scalar_lea.vmem %s9, %s657
        $region68: #{roberta_classifier_forward.1} parent=47 // pred_fallthru
          _
        // Predicated region
        $region69: #{roberta_classifier_forward.1} parent=47 // pred_check
          %p659 = pneg %p283
        $region70: #{roberta_classifier_forward.1} parent=47 // pred_check_branch
          %661 = sbr.rel (%p659) target = $region72
        $region71: #{roberta_classifier_forward.1} parent=47 // pred_region
          %p662 = scmp.lt.s32.totalorder %s45, 1
          %s663 = scalar_select %p662, %s45, 1
          %s664 = scalar_lea.vmem %s10, %s663
        $region72: #{roberta_classifier_forward.1} parent=47 // pred_fallthru
          _
        // Predicated region
        $region73: #{roberta_classifier_forward.1} parent=47 // pred_check
          %p665 = pneg %p309
        $region74: #{roberta_classifier_forward.1} parent=47 // pred_check_branch
          %667 = sbr.rel (%p665) target = $region76
        $region75: #{roberta_classifier_forward.1} parent=47 // pred_region
          %p668 = scmp.lt.s32.totalorder %s45, 1
          %s669 = scalar_select %p668, %s45, 1
          %s670 = scalar_lea.vmem %s11, %s669
        $region76: #{roberta_classifier_forward.1} parent=47 // pred_fallthru
          _
        // Predicated region
        $region77: #{roberta_classifier_forward.1} parent=47 // pred_check
          %p671 = pneg %p335
        $region78: #{roberta_classifier_forward.1} parent=47 // pred_check_branch
          %673 = sbr.rel (%p671) target = $region80
        $region79: #{roberta_classifier_forward.1} parent=47 // pred_region
          %p674 = scmp.lt.s32.totalorder %s45, 1
          %s675 = scalar_select %p674, %s45, 1
          %s676 = smul.addr %s675, 4
          %s677 = smul.addr %s676, 4
          %s678 = scalar_lea.vmem %s12, %s677
        $region80: #{roberta_classifier_forward.1} parent=47 // pred_fallthru
          _
        // Predicated region
        $region81: #{roberta_classifier_forward.1} parent=47 // pred_check
          %p679 = pneg %p361
        $region82: #{roberta_classifier_forward.1} parent=47 // pred_check_branch
          %681 = sbr.rel (%p679) target = $region84
        $region83: #{roberta_classifier_forward.1} parent=47 // pred_region
          %p682 = scmp.lt.s32.totalorder %s45, 1
          %s683 = scalar_select %p682, %s45, 1
          %s684 = scalar_lea.vmem %s13, %s683
        $region84: #{roberta_classifier_forward.1} parent=47 // pred_fallthru
          _
        // Predicated region
        $region85: #{roberta_classifier_forward.1} parent=47 // pred_check
          %p685 = pneg %p387
        $region86: #{roberta_classifier_forward.1} parent=47 // pred_check_branch
          %687 = sbr.rel (%p685) target = $region88
        $region87: #{roberta_classifier_forward.1} parent=47 // pred_region
          %p688 = scmp.lt.s32.totalorder %s45, 1
          %s689 = scalar_select %p688, %s45, 1
          %s690 = smul.addr %s689, 8
          %s691 = smul.addr %s690, 4
          %s692 = scalar_lea.vmem %s14, %s691
        $region88: #{roberta_classifier_forward.1} parent=47 // pred_fallthru
          _
        // Predicated region
        $region89: #{roberta_classifier_forward.1} parent=47 // pred_check
          %p693 = pneg %p413
        $region90: #{roberta_classifier_forward.1} parent=47 // pred_check_branch
          %695 = sbr.rel (%p693) target = $region92
        $region91: #{roberta_classifier_forward.1} parent=47 // pred_region
          %p696 = scmp.lt.s32.totalorder %s45, 1
          %s697 = scalar_select %p696, %s45, 1
          %s698 = scalar_lea.vmem %s15, %s697
        $region92: #{roberta_classifier_forward.1} parent=47 // pred_fallthru
          _
        // Predicated region
        $region93: #{roberta_classifier_forward.1} parent=47 // pred_check
          %p699 = pneg %p439
        $region94: #{roberta_classifier_forward.1} parent=47 // pred_check_branch
          %701 = sbr.rel (%p699) target = $region96
        $region95: #{roberta_classifier_forward.1} parent=47 // pred_region
          %p702 = scmp.lt.s32.totalorder %s45, 1
          %s703 = scalar_select %p702, %s45, 1
          %s704 = scalar_lea.vmem %s16, %s703
        $region96: #{roberta_classifier_forward.1} parent=47 // pred_fallthru
          _
        // Predicated region
        $region97: #{roberta_classifier_forward.1} parent=47 // pred_check
          %p705 = pneg %p465
        $region98: #{roberta_classifier_forward.1} parent=47 // pred_check_branch
          %707 = sbr.rel (%p705) target = $region100
        $region99: #{roberta_classifier_forward.1} parent=47 // pred_region
          %p708 = scmp.lt.s32.totalorder %s45, 1
          %s709 = scalar_select %p708, %s45, 1
          %s710 = scalar_lea.vmem %s17, %s709
        $region100: #{roberta_classifier_forward.1} parent=47 // pred_fallthru
          _
      $region48: #{roberta_classifier_forward.1} parent=5 // pred_fallthru
        _
      %p711 = scmp.le.s32.totalorder 1, %s37
      %p712 = scmp.lt.s32.totalorder %s37, 5
      %p713 = pnand %p711, %p712
      %p714 = pneg %p713
      // Predicated region
      $region101: #{roberta_classifier_forward.1} parent=5 // pred_check
        _
      $region102: #{roberta_classifier_forward.1} parent=5 // pred_check_branch
        %716 = sbr.rel (%p713) target = $region104
      $region103: #{roberta_classifier_forward.1} parent=5 // pred_region
        %s717 = ssub.s32 %s37, 1
        %p718 = scmp.lt.s32.totalorder %s46, 1
        %s719 = scalar_select %p718, %s46, 1
        %s720 = smul.addr %s719, 8
        %s721 = scalar_lea.vmem %s1, %s720
        %p722 = pneg %p75
        %p723 = pneg %p72
        %p724 = pneg %p96
        %p725 = pneg %p93
        %p726 = pneg %p117
        %p727 = pneg %p114
        %p728 = pneg %p138
        %p729 = pneg %p135
        %p730 = pneg %p159
        %p731 = pneg %p156
        %p732 = scmp.lt.s32.totalorder %s47, 1
        %s733 = scalar_select %p732, %s47, 1
        %s734 = smul.addr %s733, 4
        %s735 = smul.addr %s734, 4
        %s736 = scalar_lea.vmem %s6, %s735
        %p737 = pneg %p185
        %p738 = pneg %p182
        %p739 = scmp.lt.s32.totalorder %s47, 1
        %s740 = scalar_select %p739, %s47, 1
        %s741 = scalar_lea.vmem %s7, %s740
        %p742 = pneg %p211
        %p743 = pneg %p208
        %p744 = scmp.lt.s32.totalorder %s47, 1
        %s745 = scalar_select %p744, %s47, 1
        %s746 = smul.addr %s745, 4
        %s747 = smul.addr %s746, 4
        %s748 = scalar_lea.vmem %s8, %s747
        %p749 = pneg %p237
        %p750 = pneg %p234
        %p751 = scmp.lt.s32.totalorder %s47, 1
        %s752 = scalar_select %p751, %s47, 1
        %s753 = scalar_lea.vmem %s9, %s752
        %p754 = pneg %p263
        %p755 = pneg %p260
        %p756 = scmp.lt.s32.totalorder %s47, 1
        %s757 = scalar_select %p756, %s47, 1
        %s758 = scalar_lea.vmem %s10, %s757
        %p759 = pneg %p289
        %p760 = pneg %p286
        %p761 = scmp.lt.s32.totalorder %s47, 1
        %s762 = scalar_select %p761, %s47, 1
        %s763 = scalar_lea.vmem %s11, %s762
        %p764 = pneg %p315
        %p765 = pneg %p312
        %p766 = scmp.lt.s32.totalorder %s47, 1
        %s767 = scalar_select %p766, %s47, 1
        %s768 = smul.addr %s767, 4
        %s769 = smul.addr %s768, 4
        %s770 = scalar_lea.vmem %s12, %s769
        %p771 = pneg %p341
        %p772 = pneg %p338
        %p773 = scmp.lt.s32.totalorder %s47, 1
        %s774 = scalar_select %p773, %s47, 1
        %s775 = scalar_lea.vmem %s13, %s774
        %p776 = pneg %p367
        %p777 = pneg %p364
        %p778 = scmp.lt.s32.totalorder %s47, 1
        %s779 = scalar_select %p778, %s47, 1
        %s780 = smul.addr %s779, 8
        %s781 = smul.addr %s780, 4
        %s782 = scalar_lea.vmem %s14, %s781
        %p783 = pneg %p393
        %p784 = pneg %p390
        %p785 = scmp.lt.s32.totalorder %s47, 1
        %s786 = scalar_select %p785, %s47, 1
        %s787 = scalar_lea.vmem %s15, %s786
        %p788 = pneg %p419
        %p789 = pneg %p416
        %p790 = scmp.lt.s32.totalorder %s47, 1
        %s791 = scalar_select %p790, %s47, 1
        %s792 = scalar_lea.vmem %s16, %s791
        %p793 = pneg %p445
        %p794 = pneg %p442
        %p795 = scmp.lt.s32.totalorder %s47, 1
        %s796 = scalar_select %p795, %s47, 1
        %s797 = scalar_lea.vmem %s17, %s796
        %p798 = pneg %p471
        %p799 = pneg %p468
        %p800 = pneg %p492
        %p801 = pneg %p489
        %p802 = pneg %p513
        %p803 = pneg %p510
        %p804 = pneg %p534
        %p805 = pneg %p531
        %p806 = pneg %p555
        %p807 = pneg %p552
        %p808 = pneg %p581
        %p809 = pneg %p578
        %s810 = sand.u32 %s568, 1
        %s811 = scalar_lea.sflag [#allocation7], %s810
        %s812 = sand.u32 %s568, 1
        %s813 = scalar_lea.vmem [#allocation6], %s812
        %p814 = scmp.lt.s32.totalorder %s46, 1
        %s815 = scalar_select %p814, %s46, 1
        %s816 = smul.addr %s815, 8
        %s817 = scalar_lea.vmem %s1, %s816
        %p818 = scmp.lt.s32.totalorder %s47, 1
        %s819 = scalar_select %p818, %s47, 1
        %s820 = smul.addr %s819, 4
        %s821 = smul.addr %s820, 4
        %s822 = scalar_lea.vmem %s6, %s821
        %p823 = scmp.lt.s32.totalorder %s47, 1
        %s824 = scalar_select %p823, %s47, 1
        %s825 = scalar_lea.vmem %s7, %s824
        %p826 = scmp.lt.s32.totalorder %s47, 1
        %s827 = scalar_select %p826, %s47, 1
        %s828 = smul.addr %s827, 4
        %s829 = smul.addr %s828, 4
        %s830 = scalar_lea.vmem %s8, %s829
        %p831 = scmp.lt.s32.totalorder %s47, 1
        %s832 = scalar_select %p831, %s47, 1
        %s833 = scalar_lea.vmem %s9, %s832
        %p834 = scmp.lt.s32.totalorder %s47, 1
        %s835 = scalar_select %p834, %s47, 1
        %s836 = scalar_lea.vmem %s10, %s835
        %p837 = scmp.lt.s32.totalorder %s47, 1
        %s838 = scalar_select %p837, %s47, 1
        %s839 = scalar_lea.vmem %s11, %s838
        %p840 = scmp.lt.s32.totalorder %s47, 1
        %s841 = scalar_select %p840, %s47, 1
        %s842 = smul.addr %s841, 4
        %s843 = smul.addr %s842, 4
        %s844 = scalar_lea.vmem %s12, %s843
        %p845 = scmp.lt.s32.totalorder %s47, 1
        %s846 = scalar_select %p845, %s47, 1
        %s847 = scalar_lea.vmem %s13, %s846
        %p848 = scmp.lt.s32.totalorder %s47, 1
        %s849 = scalar_select %p848, %s47, 1
        %s850 = smul.addr %s849, 8
        %s851 = smul.addr %s850, 4
        %s852 = scalar_lea.vmem %s14, %s851
        %p853 = scmp.lt.s32.totalorder %s47, 1
        %s854 = scalar_select %p853, %s47, 1
        %s855 = scalar_lea.vmem %s15, %s854
        %p856 = scmp.lt.s32.totalorder %s47, 1
        %s857 = scalar_select %p856, %s47, 1
        %s858 = scalar_lea.vmem %s16, %s857
        %p859 = scmp.lt.s32.totalorder %s47, 1
        %s860 = scalar_select %p859, %s47, 1
        %s861 = scalar_lea.vmem %s17, %s860
        %p863 = scmp.eq.s32.totalorder %s47, 0
        // Predicated region
        $region105: #{roberta_classifier_forward.1} parent=103 // pred_check
          %p864 = pneg %p863
        $region106: #{roberta_classifier_forward.1} parent=103 // pred_check_branch
          %866 = sbr.rel (%p864) target = $region108
        $region107: #{roberta_classifier_forward.1} parent=103 // pred_region
          %v867 = vld [vmem:[%s817] sm:$0xff]
          %v868 = vld [vmem:[%s2] sm:$0xff]
          %v869 = vadd.f32 %v867, %v868
          %v870 = vld [vmem:[%s3] sm:$0x1]
          %v872 = vlaneseq
          %v873 = vshrl.u32 %v872, 7
          %v874 = vsub.s32 0, %v873
          %v875 = vrot.slane %v870, %v874
          %v877 = vadd.f32 %v869, %v875
          %v878 = vld [vmem:[%s4] sm:$0x1]
          %v879 = vld [vmem:[%s5] sm:$0x1]
          %vm880 = vcmask 261120
          %v881 = vsel %vm880, %v877, 0.0
          %882 = vadd.xlane.f32.xlu0 %v881
          %v883 = vpop.xlane.xlu0 %882
          %v884 = vrcp.pop 32.0
          %v885 = vmul.f32 %v883, %v884
          %v886 = vsub.f32 %v877, %v885
          %v887 = vmul.f32 %v886, %v886
          %v888 = vsel %vm880, %v887, 0.0
          %889 = vadd.xlane.f32.xlu0 %v888
          %v890 = vpop.xlane.xlu0 %889
          %v891 = vmul.f32 %v890, %v884
          %v892 = vadd.f32 %v891, 1e-05
          %v893 = vrsqrt.pop %v892
          %v894 = vmul.f32 %v886, %v893
          %v896 = vlaneseq
          %v897 = vshrl.u32 %v896, 7
          %v898 = vsub.s32 0, %v897
          %v899 = vrot.slane %v878, %v898
          %v901 = vmul.f32 %v894, %v899
          %v903 = vlaneseq
          %v904 = vshrl.u32 %v903, 7
          %v905 = vsub.s32 0, %v904
          %v906 = vrot.slane %v879, %v905
          %v908 = vadd.f32 %v901, %v906
          %909 = vst.msk [vmem:[#allocation2] sm:$0xff] %vm880, %v908
        $region108: #{roberta_classifier_forward.1} parent=103 // pred_fallthru
          _
        %s910 = sld [smem:[#allocation5 + %s46]]
        %v911 = vlaneseq
        %v912 = vand.u32 %v911, 127
        %v913 = vstv %s910
        %vm914 = vcmp.lt.s32.totalorder %v912, %v913
        %v915 = vsel %vm914, 0.0, -1e+09
        %v916 = vld [vmem:[#allocation2] sm:$0xff]
        %v917 = vpack.c.bf16 %v916, %v916
        %v918 = vld [vmem:[%s822] sm:$0xf]
        %v919 = vld [vmem:[%s822 + $0x4] sm:$0xf]
        %v920 = vld [vmem:[%s822 + $0x8] sm:$0xf]
        %v921 = vld [vmem:[%s822 + $0xc] sm:$0xf]
        %v922 = vld [vmem:[%s825] sm:$0x1]
        %v924 = vlaneseq
        %v925 = vshrl.u32 %v924, 7
        %v926 = vsub.s32 0, %v925
        %v927 = vrot.slane %v922, %v926
        %v933 = vunpack.c.l.b16 %v918
        %v934 = vunpack.c.l.b16 %v919
        %v935 = vunpack.c.l.b16 %v920
        %v936 = vunpack.c.l.b16 %v921
        %v937 = vpack.c.b16 %v934, %v933
        %v938 = vpack.c.b16 %v936, %v935
        %vm941 = vcmask 261120
        %v943 = vsel %vm941, %v917, 0
        %945 = vmatprep.subr.bf16.mxu0 0
        %946 = vmatpush1.bf16.msra.mxu0 %v937
        %947 = vmatprep.subr.bf16.mxu0 0
        %948 = vmatpush1.bf16.msra.mxu0 %v938
        %949 = vmatprep.subr.bf16.mxu0 0
        %950 = vmatpush1.bf16.msra.mxu0 0
        %951 = vmatprep.subr.bf16.mxu0 0
        %952 = vmatpush1.bf16.msra.mxu0 0
        %953 = vmatprep.subr.bf16.mxu0 0
        %954 = vmatpush1.bf16.msra.mxu0 0
        %955 = vmatprep.subr.bf16.mxu0 0
        %956 = vmatpush1.bf16.msra.mxu0 0
        %957 = vmatprep.subr.bf16.mxu0 0
        %958 = vmatpush1.bf16.msra.mxu0 0
        %959 = vmatprep.subr.bf16.mxu0 0
        %960 = vmatpush1.bf16.msra.mxu0 0
        %961 = vmatprep.subr.bf16.mxu0 0
        %962 = vmatpush1.bf16.msra.mxu0 0
        %963 = vmatprep.subr.bf16.mxu0 0
        %964 = vmatpush1.bf16.msra.mxu0 0
        %965 = vmatprep.subr.bf16.mxu0 0
        %966 = vmatpush1.bf16.msra.mxu0 0
        %967 = vmatprep.subr.bf16.mxu0 0
        %968 = vmatpush1.bf16.msra.mxu0 0
        %969 = vmatprep.subr.bf16.mxu0 0
        %970 = vmatpush1.bf16.msra.mxu0 0
        %971 = vmatprep.subr.bf16.mxu0 0
        %972 = vmatpush1.bf16.msra.mxu0 0
        %973 = vmatprep.subr.bf16.mxu0 0
        %974 = vmatpush1.bf16.msra.mxu0 0
        %975 = vmatprep.subr.bf16.mxu0 0
        %976 = vmatpush1.bf16.msra.mxu0 0
        %977 = vmatprep.mubr.bf16.mxu0 0
        %978 = vmatmul.mubr.bf16.gmra.mrb[0].mxu0 %v943
        %v979 = vpop.f32.mrb[0].mxu0
        %v980 = vadd.f32 %v927, %v979
        %v981 = vpop.f32.mrb[0].mxu0
        %v982 = vpop.f32.mrb[0].mxu0
        %v983 = vpop.f32.mrb[0].mxu0
        %984 = vdwg.mxu0
        %v985 = vpack.c.bf16 %v980, %v980
        %987 = vrot.lane.b32.xlu0 %v985, 96
        %v988 = vpop.permute.xlu0 %987
        %vm989 = vcmask 64512
        %v991 = vsel %vm989, %v985, 0
        %v994 = vsel %vm989, %v988, 0
        %996 = vmatprep.subr.bf16.mxu0 0
        %997 = vmatpush1.bf16.xpose.msra.mxu0 %v994
        %998 = vmatprep.subr.bf16.mxu0 0
        %999 = vmatpush1.bf16.xpose.msra.mxu0 0
        %1000 = vmatprep.subr.bf16.mxu0 0
        %1001 = vmatpush1.bf16.xpose.msra.mxu0 0
        %1002 = vmatprep.subr.bf16.mxu0 0
        %1003 = vmatpush1.bf16.xpose.msra.mxu0 0
        %1004 = vmatprep.subr.bf16.mxu0 0
        %1005 = vmatpush1.bf16.xpose.msra.mxu0 0
        %1006 = vmatprep.subr.bf16.mxu0 0
        %1007 = vmatpush1.bf16.xpose.msra.mxu0 0
        %1008 = vmatprep.subr.bf16.mxu0 0
        %1009 = vmatpush1.bf16.xpose.msra.mxu0 0
        %1010 = vmatprep.subr.bf16.mxu0 0
        %1011 = vmatpush1.bf16.xpose.msra.mxu0 0
        %1012 = vmatprep.subr.bf16.mxu0 0
        %1013 = vmatpush1.bf16.xpose.msra.mxu0 0
        %1014 = vmatprep.subr.bf16.mxu0 0
        %1015 = vmatpush1.bf16.xpose.msra.mxu0 0
        %1016 = vmatprep.subr.bf16.mxu0 0
        %1017 = vmatpush1.bf16.xpose.msra.mxu0 0
        %1018 = vmatprep.subr.bf16.mxu0 0
        %1019 = vmatpush1.bf16.xpose.msra.mxu0 0
        %1020 = vmatprep.subr.bf16.mxu0 0
        %1021 = vmatpush1.bf16.xpose.msra.mxu0 0
        %1022 = vmatprep.subr.bf16.mxu0 0
        %1023 = vmatpush1.bf16.xpose.msra.mxu0 0
        %1024 = vmatprep.subr.bf16.mxu0 0
        %1025 = vmatpush1.bf16.xpose.msra.mxu0 0
        %1026 = vmatprep.subr.bf16.mxu0 0
        %1027 = vmatpush1.bf16.xpose.msra.mxu0 0
        %1028 = vmatprep.mubr.bf16.mxu0 0
        %1029 = vmatmul.mubr.bf16.gmra.mrb[0].mxu0 %v991
        %v1030 = vpop.f32.mrb[0].mxu0
        %v1031 = vadd.f32 0.0, %v1030
        %v1032 = vpop.f32.mrb[0].mxu0
        %v1033 = vpop.f32.mrb[0].mxu0
        %v1034 = vpop.f32.mrb[0].mxu0
        %1035 = vdwg.mxu0
        %v1036 = vmul.f32 %v1031, 0.35355338
        %v1037 = vadd.f32 %v1036, %v915
        %v1038 = vsel %vm989, %v1037, -inf
        %1039 = vmax.xlane.f32.xlu0 %v1038
        %v1040 = vpop.xlane.xlu0 %1039
        %v1041 = vsub.f32 %v1037, %v1040
        %v1042 = vmul.f32 %v1041, 1.442695
        %v1043 = vpow.pop %v1042
        %v1044 = vsel %vm989, %v1043, 0.0
        %1045 = vadd.xlane.f32.xlu0 %v1044
        %v1046 = vpop.xlane.xlu0 %1045
        %v1047 = vrcp.pop %v1046
        %v1048 = vmul.f32 %v1043, %v1047
        %v1049 = vpack.c.bf16 %v1048, %v1048
        %1050 = vrot.lane.b32.xlu0 %v985, 64
        %v1051 = vpop.permute.xlu0 %1050
        %v1053 = vsel %vm989, %v1049, 0
        %vm1055 = vcmask 1043456
        %v1057 = vsel %vm1055, %v1051, 0
        %1059 = vmatprep.subr.bf16.mxu0 0
        %1060 = vmatpush1.bf16.msra.mxu0 %v1057
        %1061 = vmatprep.subr.bf16.mxu0 0
        %1062 = vmatpush1.bf16.msra.mxu0 0
        %1063 = vmatprep.subr.bf16.mxu0 0
        %1064 = vmatpush1.bf16.msra.mxu0 0
        %1065 = vmatprep.subr.bf16.mxu0 0
        %1066 = vmatpush1.bf16.msra.mxu0 0
        %1067 = vmatprep.subr.bf16.mxu0 0
        %1068 = vmatpush1.bf16.msra.mxu0 0
        %1069 = vmatprep.subr.bf16.mxu0 0
        %1070 = vmatpush1.bf16.msra.mxu0 0
        %1071 = vmatprep.subr.bf16.mxu0 0
        %1072 = vmatpush1.bf16.msra.mxu0 0
        %1073 = vmatprep.subr.bf16.mxu0 0
        %1074 = vmatpush1.bf16.msra.mxu0 0
        %1075 = vmatprep.subr.bf16.mxu0 0
        %1076 = vmatpush1.bf16.msra.mxu0 0
        %1077 = vmatprep.subr.bf16.mxu0 0
        %1078 = vmatpush1.bf16.msra.mxu0 0
        %1079 = vmatprep.subr.bf16.mxu0 0
        %1080 = vmatpush1.bf16.msra.mxu0 0
        %1081 = vmatprep.subr.bf16.mxu0 0
        %1082 = vmatpush1.bf16.msra.mxu0 0
        %1083 = vmatprep.subr.bf16.mxu0 0
        %1084 = vmatpush1.bf16.msra.mxu0 0
        %1085 = vmatprep.subr.bf16.mxu0 0
        %1086 = vmatpush1.bf16.msra.mxu0 0
        %1087 = vmatprep.subr.bf16.mxu0 0
        %1088 = vmatpush1.bf16.msra.mxu0 0
        %1089 = vmatprep.subr.bf16.mxu0 0
        %1090 = vmatpush1.bf16.msra.mxu0 0
        %1091 = vmatprep.mubr.bf16.mxu0 0
        %1092 = vmatmul.mubr.bf16.gmra.mrb[0].mxu0 %v1053
        %v1093 = vpop.f32.mrb[0].mxu0
        %v1094 = vadd.f32 0.0, %v1093
        %v1095 = vpop.f32.mrb[0].mxu0
        %v1096 = vpop.f32.mrb[0].mxu0
        %v1097 = vpop.f32.mrb[0].mxu0
        %1098 = vdwg.mxu0
        %1099 = vst.msk [vmem:[#allocation3] sm:$0xff] %vm989, %v1094
        %1100 = vrot.lane.b32.xlu0 %v985, 120
        %v1101 = vpop.permute.xlu0 %1100
        %1102 = vrot.lane.b32.xlu0 %v985, 88
        %v1103 = vpop.permute.xlu0 %1102
        %v1105 = vsel %vm989, %v1101, 0
        %v1108 = vsel %vm989, %v1103, 0
        %1110 = vmatprep.subr.bf16.mxu0 0
        %1111 = vmatpush1.bf16.xpose.msra.mxu0 %v1108
        %1112 = vmatprep.subr.bf16.mxu0 0
        %1113 = vmatpush1.bf16.xpose.msra.mxu0 0
        %1114 = vmatprep.subr.bf16.mxu0 0
        %1115 = vmatpush1.bf16.xpose.msra.mxu0 0
        %1116 = vmatprep.subr.bf16.mxu0 0
        %1117 = vmatpush1.bf16.xpose.msra.mxu0 0
        %1118 = vmatprep.subr.bf16.mxu0 0
        %1119 = vmatpush1.bf16.xpose.msra.mxu0 0
        %1120 = vmatprep.subr.bf16.mxu0 0
        %1121 = vmatpush1.bf16.xpose.msra.mxu0 0
        %1122 = vmatprep.subr.bf16.mxu0 0
        %1123 = vmatpush1.bf16.xpose.msra.mxu0 0
        %1124 = vmatprep.subr.bf16.mxu0 0
        %1125 = vmatpush1.bf16.xpose.msra.mxu0 0
        %1126 = vmatprep.subr.bf16.mxu0 0
        %1127 = vmatpush1.bf16.xpose.msra.mxu0 0
        %1128 = vmatprep.subr.bf16.mxu0 0
        %1129 = vmatpush1.bf16.xpose.msra.mxu0 0
        %1130 = vmatprep.subr.bf16.mxu0 0
        %1131 = vmatpush1.bf16.xpose.msra.mxu0 0
        %1132 = vmatprep.subr.bf16.mxu0 0
        %1133 = vmatpush1.bf16.xpose.msra.mxu0 0
        %1134 = vmatprep.subr.bf16.mxu0 0
        %1135 = vmatpush1.bf16.xpose.msra.mxu0 0
        %1136 = vmatprep.subr.bf16.mxu0 0
        %1137 = vmatpush1.bf16.xpose.msra.mxu0 0
        %1138 = vmatprep.subr.bf16.mxu0 0
        %1139 = vmatpush1.bf16.xpose.msra.mxu0 0
        %1140 = vmatprep.subr.bf16.mxu0 0
        %1141 = vmatpush1.bf16.xpose.msra.mxu0 0
        %1142 = vmatprep.mubr.bf16.mxu0 0
        %1143 = vmatmul.mubr.bf16.gmra.mrb[0].mxu0 %v1105
        %v1144 = vpop.f32.mrb[0].mxu0
        %v1145 = vadd.f32 0.0, %v1144
        %v1146 = vpop.f32.mrb[0].mxu0
        %v1147 = vpop.f32.mrb[0].mxu0
        %v1148 = vpop.f32.mrb[0].mxu0
        %1149 = vdwg.mxu0
        %v1150 = vmul.f32 %v1145, 0.35355338
        %v1151 = vadd.f32 %v1150, %v915
        %v1152 = vsel %vm989, %v1151, -inf
        %1153 = vmax.xlane.f32.xlu0 %v1152
        %v1154 = vpop.xlane.xlu0 %1153
        %v1155 = vsub.f32 %v1151, %v1154
        %v1156 = vmul.f32 %v1155, 1.442695
        %v1157 = vpow.pop %v1156
        %v1158 = vsel %vm989, %v1157, 0.0
        %1159 = vadd.xlane.f32.xlu0 %v1158
        %v1160 = vpop.xlane.xlu0 %1159
        %v1161 = vrcp.pop %v1160
        %v1162 = vmul.f32 %v1157, %v1161
        %v1163 = vpack.c.bf16 %v1162, %v1162
        %1164 = vrot.lane.b32.xlu0 %v985, 56
        %v1165 = vpop.permute.xlu0 %1164
        %v1167 = vsel %vm989, %v1163, 0
        %v1170 = vsel %vm1055, %v1165, 0
        %1172 = vmatprep.subr.bf16.mxu0 0
        %1173 = vmatpush1.bf16.msra.mxu0 %v1170
        %1174 = vmatprep.subr.bf16.mxu0 0
        %1175 = vmatpush1.bf16.msra.mxu0 0
        %1176 = vmatprep.subr.bf16.mxu0 0
        %1177 = vmatpush1.bf16.msra.mxu0 0
        %1178 = vmatprep.subr.bf16.mxu0 0
        %1179 = vmatpush1.bf16.msra.mxu0 0
        %1180 = vmatprep.subr.bf16.mxu0 0
        %1181 = vmatpush1.bf16.msra.mxu0 0
        %1182 = vmatprep.subr.bf16.mxu0 0
        %1183 = vmatpush1.bf16.msra.mxu0 0
        %1184 = vmatprep.subr.bf16.mxu0 0
        %1185 = vmatpush1.bf16.msra.mxu0 0
        %1186 = vmatprep.subr.bf16.mxu0 0
        %1187 = vmatpush1.bf16.msra.mxu0 0
        %1188 = vmatprep.subr.bf16.mxu0 0
        %1189 = vmatpush1.bf16.msra.mxu0 0
        %1190 = vmatprep.subr.bf16.mxu0 0
        %1191 = vmatpush1.bf16.msra.mxu0 0
        %1192 = vmatprep.subr.bf16.mxu0 0
        %1193 = vmatpush1.bf16.msra.mxu0 0
        %1194 = vmatprep.subr.bf16.mxu0 0
        %1195 = vmatpush1.bf16.msra.mxu0 0
        %1196 = vmatprep.subr.bf16.mxu0 0
        %1197 = vmatpush1.bf16.msra.mxu0 0
        %1198 = vmatprep.subr.bf16.mxu0 0
        %1199 = vmatpush1.bf16.msra.mxu0 0
        %1200 = vmatprep.subr.bf16.mxu0 0
        %1201 = vmatpush1.bf16.msra.mxu0 0
        %1202 = vmatprep.subr.bf16.mxu0 0
        %1203 = vmatpush1.bf16.msra.mxu0 0
        %1204 = vmatprep.mubr.bf16.mxu0 0
        %1205 = vmatmul.mubr.bf16.gmra.mrb[0].mxu0 %v1167
        %v1206 = vpop.f32.mrb[0].mxu0
        %v1207 = vadd.f32 0.0, %v1206
        %v1208 = vpop.f32.mrb[0].mxu0
        %v1209 = vpop.f32.mrb[0].mxu0
        %v1210 = vpop.f32.mrb[0].mxu0
        %1211 = vdwg.mxu0
        %1213 = vrot.lane.b32.xlu0 %v1207, 8
        %v1214 = vpop.permute.xlu0 %1213
        %vm1216 = vcmask 130112
        %1217 = vst.msk [vmem:[#allocation3] sm:$0xff] %vm1216, %v1214
        %1218 = vrot.lane.b32.xlu0 %v985, 112
        %v1219 = vpop.permute.xlu0 %1218
        %1220 = vrot.lane.b32.xlu0 %v985, 80
        %v1221 = vpop.permute.xlu0 %1220
        %v1223 = vsel %vm989, %v1219, 0
        %v1226 = vsel %vm989, %v1221, 0
        %1228 = vmatprep.subr.bf16.mxu0 0
        %1229 = vmatpush1.bf16.xpose.msra.mxu0 %v1226
        %1230 = vmatprep.subr.bf16.mxu0 0
        %1231 = vmatpush1.bf16.xpose.msra.mxu0 0
        %1232 = vmatprep.subr.bf16.mxu0 0
        %1233 = vmatpush1.bf16.xpose.msra.mxu0 0
        %1234 = vmatprep.subr.bf16.mxu0 0
        %1235 = vmatpush1.bf16.xpose.msra.mxu0 0
        %1236 = vmatprep.subr.bf16.mxu0 0
        %1237 = vmatpush1.bf16.xpose.msra.mxu0 0
        %1238 = vmatprep.subr.bf16.mxu0 0
        %1239 = vmatpush1.bf16.xpose.msra.mxu0 0
        %1240 = vmatprep.subr.bf16.mxu0 0
        %1241 = vmatpush1.bf16.xpose.msra.mxu0 0
        %1242 = vmatprep.subr.bf16.mxu0 0
        %1243 = vmatpush1.bf16.xpose.msra.mxu0 0
        %1244 = vmatprep.subr.bf16.mxu0 0
        %1245 = vmatpush1.bf16.xpose.msra.mxu0 0
        %1246 = vmatprep.subr.bf16.mxu0 0
        %1247 = vmatpush1.bf16.xpose.msra.mxu0 0
        %1248 = vmatprep.subr.bf16.mxu0 0
        %1249 = vmatpush1.bf16.xpose.msra.mxu0 0
        %1250 = vmatprep.subr.bf16.mxu0 0
        %1251 = vmatpush1.bf16.xpose.msra.mxu0 0
        %1252 = vmatprep.subr.bf16.mxu0 0
        %1253 = vmatpush1.bf16.xpose.msra.mxu0 0
        %1254 = vmatprep.subr.bf16.mxu0 0
        %1255 = vmatpush1.bf16.xpose.msra.mxu0 0
        %1256 = vmatprep.subr.bf16.mxu0 0
        %1257 = vmatpush1.bf16.xpose.msra.mxu0 0
        %1258 = vmatprep.subr.bf16.mxu0 0
        %1259 = vmatpush1.bf16.xpose.msra.mxu0 0
        %1260 = vmatprep.mubr.bf16.mxu0 0
        %1261 = vmatmul.mubr.bf16.gmra.mrb[0].mxu0 %v1223
        %v1262 = vpop.f32.mrb[0].mxu0
        %v1263 = vadd.f32 0.0, %v1262
        %v1264 = vpop.f32.mrb[0].mxu0
        %v1265 = vpop.f32.mrb[0].mxu0
        %v1266 = vpop.f32.mrb[0].mxu0
        %1267 = vdwg.mxu0
        %v1268 = vmul.f32 %v1263, 0.35355338
        %v1269 = vadd.f32 %v1268, %v915
        %v1270 = vsel %vm989, %v1269, -inf
        %1271 = vmax.xlane.f32.xlu0 %v1270
        %v1272 = vpop.xlane.xlu0 %1271
        %v1273 = vsub.f32 %v1269, %v1272
        %v1274 = vmul.f32 %v1273, 1.442695
        %v1275 = vpow.pop %v1274
        %v1276 = vsel %vm989, %v1275, 0.0
        %1277 = vadd.xlane.f32.xlu0 %v1276
        %v1278 = vpop.xlane.xlu0 %1277
        %v1279 = vrcp.pop %v1278
        %v1280 = vmul.f32 %v1275, %v1279
        %v1281 = vpack.c.bf16 %v1280, %v1280
        %1282 = vrot.lane.b32.xlu0 %v985, 48
        %v1283 = vpop.permute.xlu0 %1282
        %v1285 = vsel %vm989, %v1281, 0
        %v1288 = vsel %vm1055, %v1283, 0
        %1290 = vmatprep.subr.bf16.mxu0 0
        %1291 = vmatpush1.bf16.msra.mxu0 %v1288
        %1292 = vmatprep.subr.bf16.mxu0 0
        %1293 = vmatpush1.bf16.msra.mxu0 0
        %1294 = vmatprep.subr.bf16.mxu0 0
        %1295 = vmatpush1.bf16.msra.mxu0 0
        %1296 = vmatprep.subr.bf16.mxu0 0
        %1297 = vmatpush1.bf16.msra.mxu0 0
        %1298 = vmatprep.subr.bf16.mxu0 0
        %1299 = vmatpush1.bf16.msra.mxu0 0
        %1300 = vmatprep.subr.bf16.mxu0 0
        %1301 = vmatpush1.bf16.msra.mxu0 0
        %1302 = vmatprep.subr.bf16.mxu0 0
        %1303 = vmatpush1.bf16.msra.mxu0 0
        %1304 = vmatprep.subr.bf16.mxu0 0
        %1305 = vmatpush1.bf16.msra.mxu0 0
        %1306 = vmatprep.subr.bf16.mxu0 0
        %1307 = vmatpush1.bf16.msra.mxu0 0
        %1308 = vmatprep.subr.bf16.mxu0 0
        %1309 = vmatpush1.bf16.msra.mxu0 0
        %1310 = vmatprep.subr.bf16.mxu0 0
        %1311 = vmatpush1.bf16.msra.mxu0 0
        %1312 = vmatprep.subr.bf16.mxu0 0
        %1313 = vmatpush1.bf16.msra.mxu0 0
        %1314 = vmatprep.subr.bf16.mxu0 0
        %1315 = vmatpush1.bf16.msra.mxu0 0
        %1316 = vmatprep.subr.bf16.mxu0 0
        %1317 = vmatpush1.bf16.msra.mxu0 0
        %1318 = vmatprep.subr.bf16.mxu0 0
        %1319 = vmatpush1.bf16.msra.mxu0 0
        %1320 = vmatprep.subr.bf16.mxu0 0
        %1321 = vmatpush1.bf16.msra.mxu0 0
        %1322 = vmatprep.mubr.bf16.mxu0 0
        %1323 = vmatmul.mubr.bf16.gmra.mrb[0].mxu0 %v1285
        %v1324 = vpop.f32.mrb[0].mxu0
        %v1325 = vadd.f32 0.0, %v1324
        %v1326 = vpop.f32.mrb[0].mxu0
        %v1327 = vpop.f32.mrb[0].mxu0
        %v1328 = vpop.f32.mrb[0].mxu0
        %1329 = vdwg.mxu0
        %1331 = vrot.lane.b32.xlu0 %v1325, 16
        %v1332 = vpop.permute.xlu0 %1331
        %vm1334 = vcmask 195712
        %1335 = vst.msk [vmem:[#allocation3] sm:$0xff] %vm1334, %v1332
        %1336 = vrot.lane.b32.xlu0 %v985, 104
        %v1337 = vpop.permute.xlu0 %1336
        %1338 = vrot.lane.b32.xlu0 %v985, 72
        %v1339 = vpop.permute.xlu0 %1338
        %v1341 = vsel %vm989, %v1337, 0
        %v1344 = vsel %vm989, %v1339, 0
        %1346 = vmatprep.subr.bf16.mxu0 0
        %1347 = vmatpush1.bf16.xpose.msra.mxu0 %v1344
        %1348 = vmatprep.subr.bf16.mxu0 0
        %1349 = vmatpush1.bf16.xpose.msra.mxu0 0
        %1350 = vmatprep.subr.bf16.mxu0 0
        %1351 = vmatpush1.bf16.xpose.msra.mxu0 0
        %1352 = vmatprep.subr.bf16.mxu0 0
        %1353 = vmatpush1.bf16.xpose.msra.mxu0 0
        %1354 = vmatprep.subr.bf16.mxu0 0
        %1355 = vmatpush1.bf16.xpose.msra.mxu0 0
        %1356 = vmatprep.subr.bf16.mxu0 0
        %1357 = vmatpush1.bf16.xpose.msra.mxu0 0
        %1358 = vmatprep.subr.bf16.mxu0 0
        %1359 = vmatpush1.bf16.xpose.msra.mxu0 0
        %1360 = vmatprep.subr.bf16.mxu0 0
        %1361 = vmatpush1.bf16.xpose.msra.mxu0 0
        %1362 = vmatprep.subr.bf16.mxu0 0
        %1363 = vmatpush1.bf16.xpose.msra.mxu0 0
        %1364 = vmatprep.subr.bf16.mxu0 0
        %1365 = vmatpush1.bf16.xpose.msra.mxu0 0
        %1366 = vmatprep.subr.bf16.mxu0 0
        %1367 = vmatpush1.bf16.xpose.msra.mxu0 0
        %1368 = vmatprep.subr.bf16.mxu0 0
        %1369 = vmatpush1.bf16.xpose.msra.mxu0 0
        %1370 = vmatprep.subr.bf16.mxu0 0
        %1371 = vmatpush1.bf16.xpose.msra.mxu0 0
        %1372 = vmatprep.subr.bf16.mxu0 0
        %1373 = vmatpush1.bf16.xpose.msra.mxu0 0
        %1374 = vmatprep.subr.bf16.mxu0 0
        %1375 = vmatpush1.bf16.xpose.msra.mxu0 0
        %1376 = vmatprep.subr.bf16.mxu0 0
        %1377 = vmatpush1.bf16.xpose.msra.mxu0 0
        %1378 = vmatprep.mubr.bf16.mxu0 0
        %1379 = vmatmul.mubr.bf16.gmra.mrb[0].mxu0 %v1341
        %v1380 = vpop.f32.mrb[0].mxu0
        %v1381 = vadd.f32 0.0, %v1380
        %v1382 = vpop.f32.mrb[0].mxu0
        %v1383 = vpop.f32.mrb[0].mxu0
        %v1384 = vpop.f32.mrb[0].mxu0
        %1385 = vdwg.mxu0
        %v1386 = vmul.f32 %v1381, 0.35355338
        %v1387 = vadd.f32 %v1386, %v915
        %v1388 = vsel %vm989, %v1387, -inf
        %1389 = vmax.xlane.f32.xlu0 %v1388
        %v1390 = vpop.xlane.xlu0 %1389
        %v1391 = vsub.f32 %v1387, %v1390
        %v1392 = vmul.f32 %v1391, 1.442695
        %v1393 = vpow.pop %v1392
        %v1394 = vsel %vm989, %v1393, 0.0
        %1395 = vadd.xlane.f32.xlu0 %v1394
        %v1396 = vpop.xlane.xlu0 %1395
        %v1397 = vrcp.pop %v1396
        %v1398 = vmul.f32 %v1393, %v1397
        %v1399 = vpack.c.bf16 %v1398, %v1398
        %1400 = vrot.lane.b32.xlu0 %v985, 40
        %v1401 = vpop.permute.xlu0 %1400
        %v1403 = vsel %vm989, %v1399, 0
        %v1406 = vsel %vm1055, %v1401, 0
        %1408 = vmatprep.subr.bf16.mxu0 0
        %1409 = vmatpush1.bf16.msra.mxu0 %v1406
        %1410 = vmatprep.subr.bf16.mxu0 0
        %1411 = vmatpush1.bf16.msra.mxu0 0
        %1412 = vmatprep.subr.bf16.mxu0 0
        %1413 = vmatpush1.bf16.msra.mxu0 0
        %1414 = vmatprep.subr.bf16.mxu0 0
        %1415 = vmatpush1.bf16.msra.mxu0 0
        %1416 = vmatprep.subr.bf16.mxu0 0
        %1417 = vmatpush1.bf16.msra.mxu0 0
        %1418 = vmatprep.subr.bf16.mxu0 0
        %1419 = vmatpush1.bf16.msra.mxu0 0
        %1420 = vmatprep.subr.bf16.mxu0 0
        %1421 = vmatpush1.bf16.msra.mxu0 0
        %1422 = vmatprep.subr.bf16.mxu0 0
        %1423 = vmatpush1.bf16.msra.mxu0 0
        %1424 = vmatprep.subr.bf16.mxu0 0
        %1425 = vmatpush1.bf16.msra.mxu0 0
        %1426 = vmatprep.subr.bf16.mxu0 0
        %1427 = vmatpush1.bf16.msra.mxu0 0
        %1428 = vmatprep.subr.bf16.mxu0 0
        %1429 = vmatpush1.bf16.msra.mxu0 0
        %1430 = vmatprep.subr.bf16.mxu0 0
        %1431 = vmatpush1.bf16.msra.mxu0 0
        %1432 = vmatprep.subr.bf16.mxu0 0
        %1433 = vmatpush1.bf16.msra.mxu0 0
        %1434 = vmatprep.subr.bf16.mxu0 0
        %1435 = vmatpush1.bf16.msra.mxu0 0
        %1436 = vmatprep.subr.bf16.mxu0 0
        %1437 = vmatpush1.bf16.msra.mxu0 0
        %1438 = vmatprep.subr.bf16.mxu0 0
        %1439 = vmatpush1.bf16.msra.mxu0 0
        %1440 = vmatprep.mubr.bf16.mxu0 0
        %1441 = vmatmul.mubr.bf16.gmra.mrb[0].mxu0 %v1403
        %v1442 = vpop.f32.mrb[0].mxu0
        %v1443 = vadd.f32 0.0, %v1442
        %v1444 = vpop.f32.mrb[0].mxu0
        %v1445 = vpop.f32.mrb[0].mxu0
        %v1446 = vpop.f32.mrb[0].mxu0
        %1447 = vdwg.mxu0
        %1449 = vrot.lane.b32.xlu0 %v1443, 24
        %v1450 = vpop.permute.xlu0 %1449
        %vm1452 = vcmask 261312
        %1453 = vst.msk [vmem:[#allocation3] sm:$0xff] %vm1452, %v1450
        %v1454 = vld [vmem:[#allocation3] sm:$0xff]
        %v1455 = vpack.c.bf16 %v1454, %v1454
        %v1456 = vld [vmem:[%s830] sm:$0xf]
        %v1457 = vld [vmem:[%s830 + $0x4] sm:$0xf]
        %v1458 = vld [vmem:[%s830 + $0x8] sm:$0xf]
        %v1459 = vld [vmem:[%s830 + $0xc] sm:$0xf]
        %v1460 = vld [vmem:[%s833] sm:$0x1]
        %v1462 = vlaneseq
        %v1463 = vshrl.u32 %v1462, 7
        %v1464 = vsub.s32 0, %v1463
        %v1465 = vrot.slane %v1460, %v1464
        %v1471 = vunpack.c.l.b16 %v1456
        %v1472 = vunpack.c.l.b16 %v1457
        %v1473 = vunpack.c.l.b16 %v1458
        %v1474 = vunpack.c.l.b16 %v1459
        %v1475 = vpack.c.b16 %v1472, %v1471
        %v1476 = vpack.c.b16 %v1474, %v1473
        %v1480 = vsel %vm941, %v1455, 0
        %1482 = vmatprep.subr.bf16.mxu0 0
        %1483 = vmatpush1.bf16.msra.mxu0 %v1475
        %1484 = vmatprep.subr.bf16.mxu0 0
        %1485 = vmatpush1.bf16.msra.mxu0 %v1476
        %1486 = vmatprep.subr.bf16.mxu0 0
        %1487 = vmatpush1.bf16.msra.mxu0 0
        %1488 = vmatprep.subr.bf16.mxu0 0
        %1489 = vmatpush1.bf16.msra.mxu0 0
        %1490 = vmatprep.subr.bf16.mxu0 0
        %1491 = vmatpush1.bf16.msra.mxu0 0
        %1492 = vmatprep.subr.bf16.mxu0 0
        %1493 = vmatpush1.bf16.msra.mxu0 0
        %1494 = vmatprep.subr.bf16.mxu0 0
        %1495 = vmatpush1.bf16.msra.mxu0 0
        %1496 = vmatprep.subr.bf16.mxu0 0
        %1497 = vmatpush1.bf16.msra.mxu0 0
        %1498 = vmatprep.subr.bf16.mxu0 0
        %1499 = vmatpush1.bf16.msra.mxu0 0
        %1500 = vmatprep.subr.bf16.mxu0 0
        %1501 = vmatpush1.bf16.msra.mxu0 0
        %1502 = vmatprep.subr.bf16.mxu0 0
        %1503 = vmatpush1.bf16.msra.mxu0 0
        %1504 = vmatprep.subr.bf16.mxu0 0
        %1505 = vmatpush1.bf16.msra.mxu0 0
        %1506 = vmatprep.subr.bf16.mxu0 0
        %1507 = vmatpush1.bf16.msra.mxu0 0
        %1508 = vmatprep.subr.bf16.mxu0 0
        %1509 = vmatpush1.bf16.msra.mxu0 0
        %1510 = vmatprep.subr.bf16.mxu0 0
        %1511 = vmatpush1.bf16.msra.mxu0 0
        %1512 = vmatprep.subr.bf16.mxu0 0
        %1513 = vmatpush1.bf16.msra.mxu0 0
        %1514 = vmatprep.mubr.bf16.mxu0 0
        %1515 = vmatmul.mubr.bf16.gmra.mrb[0].mxu0 %v1480
        %v1516 = vpop.f32.mrb[0].mxu0
        %v1517 = vadd.f32 %v1465, %v1516
        %v1518 = vpop.f32.mrb[0].mxu0
        %v1519 = vpop.f32.mrb[0].mxu0
        %v1520 = vpop.f32.mrb[0].mxu0
        %1521 = vdwg.mxu0
        %v1522 = vadd.f32 %v1517, %v916
        %v1523 = vld [vmem:[%s836] sm:$0x1]
        %v1524 = vld [vmem:[%s839] sm:$0x1]
        %v1525 = vsel %vm941, %v1522, 0.0
        %1526 = vadd.xlane.f32.xlu0 %v1525
        %v1527 = vpop.xlane.xlu0 %1526
        %v1528 = vrcp.pop 32.0
        %v1529 = vmul.f32 %v1527, %v1528
        %v1530 = vsub.f32 %v1522, %v1529
        %v1531 = vmul.f32 %v1530, %v1530
        %v1532 = vsel %vm941, %v1531, 0.0
        %1533 = vadd.xlane.f32.xlu0 %v1532
        %v1534 = vpop.xlane.xlu0 %1533
        %v1535 = vmul.f32 %v1534, %v1528
        %v1536 = vadd.f32 %v1535, 1e-05
        %v1537 = vrsqrt.pop %v1536
        %v1538 = vmul.f32 %v1530, %v1537
        %v1540 = vlaneseq
        %v1541 = vshrl.u32 %v1540, 7
        %v1542 = vsub.s32 0, %v1541
        %v1543 = vrot.slane %v1523, %v1542
        %v1545 = vmul.f32 %v1538, %v1543
        %v1547 = vlaneseq
        %v1548 = vshrl.u32 %v1547, 7
        %v1549 = vsub.s32 0, %v1548
        %v1550 = vrot.slane %v1524, %v1549
        %v1552 = vadd.f32 %v1545, %v1550
        %v1553 = vpack.c.bf16 %v1552, %v1552
        %v1554 = vld [vmem:[%s844] sm:$0xf]
        %v1555 = vld [vmem:[%s844 + $0x4] sm:$0xf]
        %v1556 = vld [vmem:[%s844 + $0x8] sm:$0xf]
        %v1557 = vld [vmem:[%s844 + $0xc] sm:$0xf]
        %v1558 = vld [vmem:[%s847] sm:$0x1]
        %v1560 = vlaneseq
        %v1561 = vshrl.u32 %v1560, 7
        %v1562 = vsub.s32 0, %v1561
        %v1563 = vrot.slane %v1558, %v1562
        %v1569 = vunpack.c.l.b16 %v1554
        %v1570 = vunpack.c.l.b16 %v1555
        %v1571 = vunpack.c.l.b16 %v1556
        %v1572 = vunpack.c.l.b16 %v1557
        %v1573 = vpack.c.b16 %v1570, %v1569
        %v1574 = vpack.c.b16 %v1572, %v1571
        %v1578 = vsel %vm941, %v1553, 0
        %1580 = vmatprep.subr.bf16.mxu0 0
        %1581 = vmatpush1.bf16.msra.mxu0 %v1573
        %1582 = vmatprep.subr.bf16.mxu0 0
        %1583 = vmatpush1.bf16.msra.mxu0 %v1574
        %1584 = vmatprep.subr.bf16.mxu0 0
        %1585 = vmatpush1.bf16.msra.mxu0 0
        %1586 = vmatprep.subr.bf16.mxu0 0
        %1587 = vmatpush1.bf16.msra.mxu0 0
        %1588 = vmatprep.subr.bf16.mxu0 0
        %1589 = vmatpush1.bf16.msra.mxu0 0
        %1590 = vmatprep.subr.bf16.mxu0 0
        %1591 = vmatpush1.bf16.msra.mxu0 0
        %1592 = vmatprep.subr.bf16.mxu0 0
        %1593 = vmatpush1.bf16.msra.mxu0 0
        %1594 = vmatprep.subr.bf16.mxu0 0
        %1595 = vmatpush1.bf16.msra.mxu0 0
        %1596 = vmatprep.subr.bf16.mxu0 0
        %1597 = vmatpush1.bf16.msra.mxu0 0
        %1598 = vmatprep.subr.bf16.mxu0 0
        %1599 = vmatpush1.bf16.msra.mxu0 0
        %1600 = vmatprep.subr.bf16.mxu0 0
        %1601 = vmatpush1.bf16.msra.mxu0 0
        %1602 = vmatprep.subr.bf16.mxu0 0
        %1603 = vmatpush1.bf16.msra.mxu0 0
        %1604 = vmatprep.subr.bf16.mxu0 0
        %1605 = vmatpush1.bf16.msra.mxu0 0
        %1606 = vmatprep.subr.bf16.mxu0 0
        %1607 = vmatpush1.bf16.msra.mxu0 0
        %1608 = vmatprep.subr.bf16.mxu0 0
        %1609 = vmatpush1.bf16.msra.mxu0 0
        %1610 = vmatprep.subr.bf16.mxu0 0
        %1611 = vmatpush1.bf16.msra.mxu0 0
        %1612 = vmatprep.mubr.bf16.mxu0 0
        %1613 = vmatmul.mubr.bf16.gmra.mrb[0].mxu0 %v1578
        %v1614 = vpop.f32.mrb[0].mxu0
        %v1615 = vadd.f32 %v1563, %v1614
        %v1616 = vpop.f32.mrb[0].mxu0
        %v1617 = vpop.f32.mrb[0].mxu0
        %v1618 = vpop.f32.mrb[0].mxu0
        %1619 = vdwg.mxu0
        %v1620 = vmul.f32 %v1615, %v1615
        %v1621 = vmul.f32 %v1615, %v1620
        %v1622 = vmul.f32 %v1621, 0.044715
        %v1623 = vadd.f32 %v1615, %v1622
        %v1624 = vmul.f32 %v1623, 0.7978846
        %v1625 = vtanh.pop %v1624
        %v1626 = vadd.f32 %v1625, 1.0
        %v1627 = vmul.f32 %v1626, 0.5
        %v1628 = vmul.f32 %v1615, %v1627
        %v1629 = vpack.c.bf16 %v1628, %v1628
        %v1630 = vld [vmem:[%s852] sm:$0xf]
        %v1631 = vld [vmem:[%s852 + $0x4] sm:$0xf]
        %v1632 = vld [vmem:[%s852 + $0x8] sm:$0xf]
        %v1633 = vld [vmem:[%s852 + $0xc] sm:$0xf]
        %v1634 = vld [vmem:[%s852 + $0x10] sm:$0xf]
        %v1635 = vld [vmem:[%s852 + $0x14] sm:$0xf]
        %v1636 = vld [vmem:[%s852 + $0x18] sm:$0xf]
        %v1637 = vld [vmem:[%s852 + $0x1c] sm:$0xf]
        %v1638 = vld [vmem:[%s855] sm:$0x1]
        %v1640 = vlaneseq
        %v1641 = vshrl.u32 %v1640, 7
        %v1642 = vsub.s32 0, %v1641
        %v1643 = vrot.slane %v1638, %v1642
        %v1653 = vunpack.c.l.b16 %v1630
        %v1654 = vunpack.c.l.b16 %v1631
        %v1655 = vunpack.c.l.b16 %v1632
        %v1656 = vunpack.c.l.b16 %v1633
        %v1657 = vunpack.c.l.b16 %v1634
        %v1658 = vunpack.c.l.b16 %v1635
        %v1659 = vunpack.c.l.b16 %v1636
        %v1660 = vunpack.c.l.b16 %v1637
        %v1661 = vpack.c.b16 %v1654, %v1653
        %v1662 = vpack.c.b16 %v1656, %v1655
        %v1663 = vpack.c.b16 %v1658, %v1657
        %v1664 = vpack.c.b16 %v1660, %v1659
        %vm1669 = vcmask 523264
        %v1671 = vsel %vm1669, %v1629, 0
        %1673 = vmatprep.subr.bf16.mxu0 0
        %1674 = vmatpush1.bf16.msra.mxu0 %v1661
        %1675 = vmatprep.subr.bf16.mxu0 0
        %1676 = vmatpush1.bf16.msra.mxu0 %v1662
        %1677 = vmatprep.subr.bf16.mxu0 0
        %1678 = vmatpush1.bf16.msra.mxu0 %v1663
        %1679 = vmatprep.subr.bf16.mxu0 0
        %1680 = vmatpush1.bf16.msra.mxu0 %v1664
        %1681 = vmatprep.subr.bf16.mxu0 0
        %1682 = vmatpush1.bf16.msra.mxu0 0
        %1683 = vmatprep.subr.bf16.mxu0 0
        %1684 = vmatpush1.bf16.msra.mxu0 0
        %1685 = vmatprep.subr.bf16.mxu0 0
        %1686 = vmatpush1.bf16.msra.mxu0 0
        %1687 = vmatprep.subr.bf16.mxu0 0
        %1688 = vmatpush1.bf16.msra.mxu0 0
        %1689 = vmatprep.subr.bf16.mxu0 0
        %1690 = vmatpush1.bf16.msra.mxu0 0
        %1691 = vmatprep.subr.bf16.mxu0 0
        %1692 = vmatpush1.bf16.msra.mxu0 0
        %1693 = vmatprep.subr.bf16.mxu0 0
        %1694 = vmatpush1.bf16.msra.mxu0 0
        %1695 = vmatprep.subr.bf16.mxu0 0
        %1696 = vmatpush1.bf16.msra.mxu0 0
        %1697 = vmatprep.subr.bf16.mxu0 0
        %1698 = vmatpush1.bf16.msra.mxu0 0
        %1699 = vmatprep.subr.bf16.mxu0 0
        %1700 = vmatpush1.bf16.msra.mxu0 0
        %1701 = vmatprep.subr.bf16.mxu0 0
        %1702 = vmatpush1.bf16.msra.mxu0 0
        %1703 = vmatprep.subr.bf16.mxu0 0
        %1704 = vmatpush1.bf16.msra.mxu0 0
        %1705 = vmatprep.mubr.bf16.mxu0 0
        %1706 = vmatmul.mubr.bf16.gmra.mrb[0].mxu0 %v1671
        %v1707 = vpop.f32.mrb[0].mxu0
        %v1708 = vadd.f32 %v1643, %v1707
        %v1709 = vpop.f32.mrb[0].mxu0
        %v1710 = vpop.f32.mrb[0].mxu0
        %v1711 = vpop.f32.mrb[0].mxu0
        %1712 = vdwg.mxu0
        %v1713 = vadd.f32 %v1708, %v1552
        %v1714 = vld [vmem:[%s858] sm:$0x1]
        %v1715 = vld [vmem:[%s861] sm:$0x1]
        %v1716 = vsel %vm941, %v1713, 0.0
        %1717 = vadd.xlane.f32.xlu0 %v1716
        %v1718 = vpop.xlane.xlu0 %1717
        %v1719 = vmul.f32 %v1718, %v1528
        %v1720 = vsub.f32 %v1713, %v1719
        %v1721 = vmul.f32 %v1720, %v1720
        %v1722 = vsel %vm941, %v1721, 0.0
        %1723 = vadd.xlane.f32.xlu0 %v1722
        %v1724 = vpop.xlane.xlu0 %1723
        %v1725 = vmul.f32 %v1724, %v1528
        %v1726 = vadd.f32 %v1725, 1e-05
        %v1727 = vrsqrt.pop %v1726
        %v1728 = vmul.f32 %v1720, %v1727
        %v1730 = vlaneseq
        %v1731 = vshrl.u32 %v1730, 7
        %v1732 = vsub.s32 0, %v1731
        %v1733 = vrot.slane %v1714, %v1732
        %v1735 = vmul.f32 %v1728, %v1733
        %v1737 = vlaneseq
        %v1738 = vshrl.u32 %v1737, 7
        %v1739 = vsub.s32 0, %v1738
        %v1740 = vrot.slane %v1715, %v1739
        %v1742 = vadd.f32 %v1735, %v1740
        %1743 = vst.msk [vmem:[#allocation2] sm:$0xff] %vm941, %v1742
        %p1744 = scmp.eq.s32.totalorder %s47, 1
        // Predicated region
        $region109: #{roberta_classifier_forward.1} parent=103 // pred_check
          %p1745 = pneg %p1744
        $region110: #{roberta_classifier_forward.1} parent=103 // pred_check_branch
          %1747 = sbr.rel (%p1745) target = $region112
        $region111: #{roberta_classifier_forward.1} parent=103 // pred_region
          %v1748 = vld [vmem:[%s18] sm:$0xff]
          %v1749 = vld [vmem:[%s18 + $0x8] sm:$0xff]
          %v1750 = vld [vmem:[%s18 + $0x10] sm:$0xff]
          %v1751 = vld [vmem:[%s18 + $0x18] sm:$0xff]
          %v1752 = vld [vmem:[%s19] sm:$0x1]
          %v1754 = vsel %vm941, %v1742, 0
          %1756 = vmatprep.subr.mxu0 0.0
          %1757 = vmatpush1.msra.mxu0 %v1748
          %1758 = vmatprep.subr.mxu0 0.0
          %1759 = vmatpush1.msra.mxu0 %v1749
          %1760 = vmatprep.subr.mxu0 0.0
          %1761 = vmatpush1.msra.mxu0 %v1750
          %1762 = vmatprep.subr.mxu0 0.0
          %1763 = vmatpush1.msra.mxu0 %v1751
          %1764 = vmatprep.subr.mxu0 0.0
          %1765 = vmatpush1.msra.mxu0 0.0
          %1766 = vmatprep.subr.mxu0 0.0
          %1767 = vmatpush1.msra.mxu0 0.0
          %1768 = vmatprep.subr.mxu0 0.0
          %1769 = vmatpush1.msra.mxu0 0.0
          %1770 = vmatprep.subr.mxu0 0.0
          %1771 = vmatpush1.msra.mxu0 0.0
          %1772 = vmatprep.subr.mxu0 0.0
          %1773 = vmatpush1.msra.mxu0 0.0
          %1774 = vmatprep.subr.mxu0 0.0
          %1775 = vmatpush1.msra.mxu0 0.0
          %1776 = vmatprep.subr.mxu0 0.0
          %1777 = vmatpush1.msra.mxu0 0.0
          %1778 = vmatprep.subr.mxu0 0.0
          %1779 = vmatpush1.msra.mxu0 0.0
          %1780 = vmatprep.subr.mxu0 0.0
          %1781 = vmatpush1.msra.mxu0 0.0
          %1782 = vmatprep.subr.mxu0 0.0
          %1783 = vmatpush1.msra.mxu0 0.0
          %1784 = vmatprep.subr.mxu0 0.0
          %1785 = vmatpush1.msra.mxu0 0.0
          %1786 = vmatprep.subr.mxu0 0.0
          %1787 = vmatpush1.msra.mxu0 0.0
          %1788 = vmatprep.subr.mxu0 0.0
          %1789 = vmatpush1.msra.mxu0 0.0
          %1790 = vmatprep.subr.mxu0 0.0
          %1791 = vmatpush1.msra.mxu0 0.0
          %1792 = vmatprep.subr.mxu0 0.0
          %1793 = vmatpush1.msra.mxu0 0.0
          %1794 = vmatprep.subr.mxu0 0.0
          %1795 = vmatpush1.msra.mxu0 0.0
          %1796 = vmatprep.subr.mxu0 0.0
          %1797 = vmatpush1.msra.mxu0 0.0
          %1798 = vmatprep.subr.mxu0 0.0
          %1799 = vmatpush1.msra.mxu0 0.0
          %1800 = vmatprep.subr.mxu0 0.0
          %1801 = vmatpush1.msra.mxu0 0.0
          %1802 = vmatprep.subr.mxu0 0.0
          %1803 = vmatpush1.msra.mxu0 0.0
          %1804 = vmatprep.subr.mxu0 0.0
          %1805 = vmatpush1.msra.mxu0 0.0
          %1806 = vmatprep.subr.mxu0 0.0
          %1807 = vmatpush1.msra.mxu0 0.0
          %1808 = vmatprep.subr.mxu0 0.0
          %1809 = vmatpush1.msra.mxu0 0.0
          %1810 = vmatprep.subr.mxu0 0.0
          %1811 = vmatpush1.msra.mxu0 0.0
          %1812 = vmatprep.subr.mxu0 0.0
          %1813 = vmatpush1.msra.mxu0 0.0
          %1814 = vmatprep.subr.mxu0 0.0
          %1815 = vmatpush1.msra.mxu0 0.0
          %1816 = vmatprep.subr.mxu0 0.0
          %1817 = vmatpush1.msra.mxu0 0.0
          %1818 = vmatprep.subr.mxu0 0.0
          %1819 = vmatpush1.msra.mxu0 0.0
          %1820 = vmatprep.mubr.f32.mxu0 0.0
          %1821 = vmatmul.mubr.f32.gmra.mrb[0].mxu0 %v1754
          %v1822 = vpop.f32.mrb[0].mxu0
          %v1823 = vadd.f32 %v1752, %v1822
          %v1824 = vpop.f32.mrb[0].mxu0
          %1825 = vdwg.mxu0
          %v1826 = vtanh.pop %v1823
          %v1827 = vld [vmem:[%s20] sm:$0xff]
          %v1828 = vld [vmem:[%s20 + $0x8] sm:$0xff]
          %v1829 = vld [vmem:[%s20 + $0x10] sm:$0xff]
          %v1830 = vld [vmem:[%s20 + $0x18] sm:$0xff]
          %v1831 = vld [vmem:[%s21] sm:$0x1]
          %v1833 = vsel %vm941, %v1826, 0
          %1835 = vmatprep.subr.mxu0 0.0
          %1836 = vmatpush1.msra.mxu0 %v1827
          %1837 = vmatprep.subr.mxu0 0.0
          %1838 = vmatpush1.msra.mxu0 %v1828
          %1839 = vmatprep.subr.mxu0 0.0
          %1840 = vmatpush1.msra.mxu0 %v1829
          %1841 = vmatprep.subr.mxu0 0.0
          %1842 = vmatpush1.msra.mxu0 %v1830
          %1843 = vmatprep.subr.mxu0 0.0
          %1844 = vmatpush1.msra.mxu0 0.0
          %1845 = vmatprep.subr.mxu0 0.0
          %1846 = vmatpush1.msra.mxu0 0.0
          %1847 = vmatprep.subr.mxu0 0.0
          %1848 = vmatpush1.msra.mxu0 0.0
          %1849 = vmatprep.subr.mxu0 0.0
          %1850 = vmatpush1.msra.mxu0 0.0
          %1851 = vmatprep.subr.mxu0 0.0
          %1852 = vmatpush1.msra.mxu0 0.0
          %1853 = vmatprep.subr.mxu0 0.0
          %1854 = vmatpush1.msra.mxu0 0.0
          %1855 = vmatprep.subr.mxu0 0.0
          %1856 = vmatpush1.msra.mxu0 0.0
          %1857 = vmatprep.subr.mxu0 0.0
          %1858 = vmatpush1.msra.mxu0 0.0
          %1859 = vmatprep.subr.mxu0 0.0
          %1860 = vmatpush1.msra.mxu0 0.0
          %1861 = vmatprep.subr.mxu0 0.0
          %1862 = vmatpush1.msra.mxu0 0.0
          %1863 = vmatprep.subr.mxu0 0.0
          %1864 = vmatpush1.msra.mxu0 0.0
          %1865 = vmatprep.subr.mxu0 0.0
          %1866 = vmatpush1.msra.mxu0 0.0
          %1867 = vmatprep.subr.mxu0 0.0
          %1868 = vmatpush1.msra.mxu0 0.0
          %1869 = vmatprep.subr.mxu0 0.0
          %1870 = vmatpush1.msra.mxu0 0.0
          %1871 = vmatprep.subr.mxu0 0.0
          %1872 = vmatpush1.msra.mxu0 0.0
          %1873 = vmatprep.subr.mxu0 0.0
          %1874 = vmatpush1.msra.mxu0 0.0
          %1875 = vmatprep.subr.mxu0 0.0
          %1876 = vmatpush1.msra.mxu0 0.0
          %1877 = vmatprep.subr.mxu0 0.0
          %1878 = vmatpush1.msra.mxu0 0.0
          %1879 = vmatprep.subr.mxu0 0.0
          %1880 = vmatpush1.msra.mxu0 0.0
          %1881 = vmatprep.subr.mxu0 0.0
          %1882 = vmatpush1.msra.mxu0 0.0
          %1883 = vmatprep.subr.mxu0 0.0
          %1884 = vmatpush1.msra.mxu0 0.0
          %1885 = vmatprep.subr.mxu0 0.0
          %1886 = vmatpush1.msra.mxu0 0.0
          %1887 = vmatprep.subr.mxu0 0.0
          %1888 = vmatpush1.msra.mxu0 0.0
          %1889 = vmatprep.subr.mxu0 0.0
          %1890 = vmatpush1.msra.mxu0 0.0
          %1891 = vmatprep.subr.mxu0 0.0
          %1892 = vmatpush1.msra.mxu0 0.0
          %1893 = vmatprep.subr.mxu0 0.0
          %1894 = vmatpush1.msra.mxu0 0.0
          %1895 = vmatprep.subr.mxu0 0.0
          %1896 = vmatpush1.msra.mxu0 0.0
          %1897 = vmatprep.subr.mxu0 0.0
          %1898 = vmatpush1.msra.mxu0 0.0
          %1899 = vmatprep.mubr.f32.mxu0 0.0
          %1900 = vmatmul.mubr.f32.gmra.mrb[0].mxu0 %v1833
          %v1901 = vpop.f32.mrb[0].mxu0
          %v1902 = vadd.f32 %v1831, %v1901
          %v1903 = vpop.f32.mrb[0].mxu0
          %1904 = vdwg.mxu0
          %v1905 = vmax.f32 %v1902, 0.0
          %1906 = vst [vmem:[%s813] sm:$0x1] %v1905
        $region112: #{roberta_classifier_forward.1} parent=103 // pred_fallthru
          _
        %s1907 = sand.u32 %s568, 1
        %s1908 = scalar_lea.sflag [#allocation7], %s1907
        %s1909 = sand.u32 %s568, 1
        %s1910 = scalar_lea.vmem [#allocation6], %s1909
        // Predicated region
        $region113: #{roberta_classifier_forward.1} parent=103 // pred_check
          %p1911 = pneg %p578
        $region114: #{roberta_classifier_forward.1} parent=103 // pred_check_branch
          %1913 = sbr.rel (%p1911) target = $region116
        $region115: #{roberta_classifier_forward.1} parent=103 // pred_region
          %s1915 = ssub.s32 16, 16
          %1916 = vsyncadd %s1908, %s1915
          %s1917 = smul.addr %s46, 16
          %s1918 = scalar_lea.hbm %s22, %s1917
          %s1920 = sshll.u32 %s1910, 4
          %s1921 = int_to_ptr.vmem [resolvable:$true] %s1920
          %1923 = dma.vmem_to_hbm [thread:$0]  %s1921, 16, %s1918, %s1908
        $region116: #{roberta_classifier_forward.1} parent=103 // pred_fallthru
          _
      $region104: #{roberta_classifier_forward.1} parent=5 // pred_fallthru
        _
      %p1924 = scmp.le.s32.totalorder 2, %s37
      // Predicated region
      $region117: #{roberta_classifier_forward.1} parent=5 // pred_check
        %p1925 = pneg %p1924
      $region118: #{roberta_classifier_forward.1} parent=5 // pred_check_branch
        %1927 = sbr.rel (%p1925) target = $region120
      $region119: #{roberta_classifier_forward.1} parent=5 // pred_region
        %s1928 = ssub.s32 %s37, 2
        // Predicated region
        $region121: #{roberta_classifier_forward.1} parent=119 // pred_check
          %p1929 = pneg %p584
        $region122: #{roberta_classifier_forward.1} parent=119 // pred_check_branch
          %1931 = sbr.rel (%p1929) target = $region124
        $region123: #{roberta_classifier_forward.1} parent=119 // pred_region
          %s1932 = sand.u32 %s569, 1
          %s1933 = scalar_lea.sflag [#allocation7], %s1932
          %s1934 = sand.u32 %s569, 1
          %s1935 = scalar_lea.vmem [#allocation6], %s1934
          %1936 = dma.done %s1933, 16
        $region124: #{roberta_classifier_forward.1} parent=119 // pred_fallthru
          _
      $region120: #{roberta_classifier_forward.1} parent=5 // pred_fallthru
        _
    $region6: #{roberta_classifier_forward.1} parent=1 // loop_footer
      %s41 = sadd.s32 1, %s37
    $region7: #{roberta_classifier_forward.1} parent=1 // loop_footer_branch
      %36 = sbr.rel target = $region3
    $region8: #{roberta_classifier_forward.1} parent=1 // loop_exit
      _
    %1937 = vsyncpa [#allocation7], 1
    %s1938 = scalar_lea.sflag [#allocation7], 1
    %1939 = vsyncpa %s1938, 1

</llo_original>
